<compile_context>
chip_gen: v6e
topology: v6e:2x2x1
jax: 0.10.0
libtpu: 0.0.40
codegen_flags: <defaults>
</compile_context>

<pallas_src>
import numpy as np

import jax
import jax.numpy as jnp
from jax import lax
from jax.experimental import pallas as pl
from jax.experimental.pallas import tpu as pltpu

BN_EPS = 1e-5

# The 8 non-center (dh, dw) tap offsets; border masks for these are
# precomputed host-side (the 3 (dh,dw)=(0,0) taps need no mask).
_OFF_TAPS = tuple((dh, dw) for dh in (-1, 0, 1) for dw in (-1, 0, 1)
                  if not (dh == 0 and dw == 0))


# ----------------------------------------------------------------------------
# Kernel: 3x3x3 conv (s=1, p=1) + folded BN(eval) + ReLU (+ 1x1x1 residual).
# Grid = (N, D // TD).  Each step computes a lane-dense (Cout, TD*H*W) output
# tile with a single K = 27*Cin bf16 matmul (f32 accumulation).
# ----------------------------------------------------------------------------
def _make_kernel(Cin, D, H, W, TD, use_halo, with_residual):
    HW = H * W
    M = TD * HW

    def kernel(*refs):
        i = 0
        xc_ref = refs[i]; i += 1                     # (1, Cin, M) center planes
        if use_halo:
            xp_ref, xn_ref = refs[i], refs[i + 1]; i += 2   # (1, Cin, HW) halos
        wf_ref, sh_ref, mk_ref = refs[i], refs[i + 1], refs[i + 2]; i += 3
        if with_residual:
            xres_ref, wres_ref = refs[i], refs[i + 1]; i += 2
        o_ref = refs[i]

        d0 = pl.program_id(1) * TD
        center = xc_ref[0]                                   # (Cin, M) bf16

        # depth halo planes (clamped fetch; zeroed at the volume edges)
        if use_halo:
            p = xp_ref[0]
            nx = xn_ref[0]
            prev = jnp.where(d0 == 0, jnp.zeros_like(p), p)
            nxt = jnp.where(d0 + TD == D, jnp.zeros_like(nx), nx)
        else:
            prev = jnp.zeros((Cin, HW), center.dtype)
            nxt = jnp.zeros((Cin, HW), center.dtype)

        # three depth-tap base slabs (kd = 0, 1, 2), each (Cin, M)
        base0 = jnp.concatenate([prev, center[:, : M - HW]], axis=1)
        base2 = jnp.concatenate([center[:, HW:], nxt], axis=1)
        bases = (base0, center, base2)

        # 8 distinct (dh, dw) border masks, loaded once, reused across kd
        mk = [mk_ref[j:j + 1, :] for j in range(len(_OFF_TAPS))]

        # im2col: (dh, dw) shifts are derived in-register (roll == flat shift
        # once the wrapped lanes are masked), no misaligned VMEM re-reads.
        pieces = []
        for kd in range(3):
            base = bases[kd]
            for dh in (-1, 0, 1):
                for dw in (-1, 0, 1):
                    if dh == 0 and dw == 0:
                        pieces.append(base)
                    else:
                        delta = dh * W + dw
                        shifted = jnp.roll(base, -delta, axis=1)
                        pieces.append(shifted * mk[_OFF_TAPS.index((dh, dw))])
        patch = jnp.concatenate(pieces, axis=0)              # (27*Cin, M) bf16

        # single MXU matmul, f32 accumulation (BN scale folded into wf)
        acc = jnp.dot(wf_ref[...], patch, preferred_element_type=jnp.float32)
        acc = jnp.maximum(acc + sh_ref[...], 0.0)

        # 1x1x1 residual projection, added after the ReLU (as in the module)
        if with_residual:
            acc = acc + jnp.dot(wres_ref[...], xres_ref[0],
                                preferred_element_type=jnp.float32)

        o_ref[0] = acc.astype(o_ref.dtype)                   # lane-dense store

    return kernel


# ----------------------------------------------------------------------------
# Tile / VMEM budgeting.
# ----------------------------------------------------------------------------
def _vmem_limit_bytes():
    try:
        cap = int(pltpu.get_tpu_info().vmem_capacity_bytes)
    except Exception:
        cap = 64 * 1024 * 1024            # conservative fallback (v7x-sized)
    # 32 MiB is <= half of physical VMEM on v5e/v6e/v7x and raises v5e's
    # 16 MiB scoped default.
    return max(16 * 1024 * 1024, min(32 * 1024 * 1024, cap // 2))


def _estimate_vmem_bytes(Cin, Cout, HW, td, with_residual):
    M = td * HW
    b = 27 * Cin * M * 2               # im2col patch (bf16)
    b += 3 * Cin * M * 2               # depth-tap base slabs
    b += 2 * Cin * M * 2               # center input block, double buffered
    b += 2 * 2 * Cin * HW * 2          # halo plane blocks, double buffered
    b += 2 * len(_OFF_TAPS) * M * 2    # border-mask block
    b += Cout * M * 4                  # f32 accumulator
    b += 2 * Cout * M * 4              # output block (<= f32), double buffered
    if with_residual:
        b += 3 * Cin * M * 2           # residual input block + in-flight value
    b += 4 * 27 * Cin * Cout + 8 * Cout
    return b


def _legal_depth_tile(D, HW, td):
    # (8,128) rule: output / center blocks need td*HW % 128 == 0; the
    # single-plane halo blocks additionally need HW % 128 == 0 (otherwise we
    # require td == D so no halo blocks are used at all).
    return D % td == 0 and (td * HW) % 128 == 0 and (td == D or HW % 128 == 0)


def _pick_depth_tile(Cin, Cout, D, HW, with_residual, budget_bytes):
    best = None
    for td in range(1, D + 1):
        if not _legal_depth_tile(D, HW, td):
            continue
        if (best is None or
                _estimate_vmem_bytes(Cin, Cout, HW, td, with_residual) <= budget_bytes):
            best = td
    assert best is not None, (
        "no legal depth tile: need depth_tile*H*W % 128 == 0 and "
        "(H*W % 128 == 0 or depth_tile == D)")
    return best


# ----------------------------------------------------------------------------
# Fused Conv3d(k=3,s=1,p=1) + BatchNorm3d(eval) + ReLU (+ 1x1x1 residual).
# ----------------------------------------------------------------------------
def conv3x3_bn_relu(x, w_oidhw, conv_bias, bn, *, out_dtype,
                    residual=None, depth_tile=None):
    """x: (N, C, D, H, W); w: (Cout, C, 3, 3, 3).
    residual: optional (res_x (N, Cres, D, H, W), wres (Cout, Cres, 1, 1, 1)),
    added AFTER the ReLU, matching the PyTorch module."""
    N, Cin, D, H, W = x.shape
    Cout = w_oidhw.shape[0]
    HW = H * W
    with_res = residual is not None

    vmem_limit = _vmem_limit_bytes()
    if depth_tile is None:
        TD = _pick_depth_tile(Cin, Cout, D, HW, with_res, int(vmem_limit * 0.6))
    else:
        TD = depth_tile
    assert _legal_depth_tile(D, HW, TD), (
        f"illegal depth_tile={TD} for D={D}, H*W={HW}")
    M = TD * HW
    use_halo = TD < D

    # fold BN (eval) into the weights (scale) and a per-channel shift
    scale = bn['gamma'] / jnp.sqrt(bn['var'] + BN_EPS)               # (Cout,)
    shift = bn['beta'] + (conv_bias - bn['mean']) * scale            # (Cout,)
    wf = jnp.transpose(w_oidhw, (0, 2, 3, 4, 1)).reshape(Cout, 27 * Cin)
    wf = (wf * scale[:, None]).astype(jnp.bfloat16)

    # 8 (dh, dw) border-validity masks, host-built bf16 {0,1} constants
    hh = np.arange(H).reshape(1, H, 1)
    ww = np.arange(W).reshape(1, 1, W)
    rows = []
    for dh, dw in _OFF_TAPS:
        ok = ((hh + dh >= 0) & (hh + dh < H) & (ww + dw >= 0) & (ww + dw < W))
        rows.append(np.broadcast_to(ok, (TD, H, W)).reshape(-1))
    masks = jnp.asarray(np.stack(rows).astype(np.float32)).astype(jnp.bfloat16)

    x_flat = x.astype(jnp.bfloat16).reshape(N, Cin, D * HW)   # bf16 inputs

    in_specs = [pl.BlockSpec((1, Cin, M), lambda n, dt: (n, 0, dt))]
    args = [x_flat]
    if use_halo:
        in_specs += [
            pl.BlockSpec((1, Cin, HW),
                         lambda n, dt: (n, 0, jnp.maximum(dt * TD - 1, 0))),
            pl.BlockSpec((1, Cin, HW),
                         lambda n, dt: (n, 0, jnp.minimum(dt * TD + TD, D - 1))),
        ]
        args += [x_flat, x_flat]
    in_specs += [
        pl.BlockSpec((Cout, 27 * Cin), lambda n, dt: (0, 0)),
        pl.BlockSpec((Cout, 1), lambda n, dt: (0, 0)),
        pl.BlockSpec((len(_OFF_TAPS), M), lambda n, dt: (0, 0)),
    ]
    args += [wf, shift.reshape(Cout, 1).astype(jnp.float32), masks]
    if with_res:
        res_x, wres_oidhw = residual
        Cres = res_x.shape[1]
        in_specs += [
            pl.BlockSpec((1, Cres, M), lambda n, dt: (n, 0, dt)),
            pl.BlockSpec((Cout, Cres), lambda n, dt: (0, 0)),
        ]
        args += [res_x.astype(jnp.bfloat16).reshape(N, Cres, D * HW),
                 wres_oidhw[:, :, 0, 0, 0].astype(jnp.bfloat16)]

    out = pl.pallas_call(
        _make_kernel(Cin, D, H, W, TD, use_halo, with_res),
        out_shape=jax.ShapeDtypeStruct((N, Cout, D * HW), out_dtype),
        grid=(N, D // TD),
        in_specs=in_specs,
        out_specs=pl.BlockSpec((1, Cout, M), lambda n, dt: (n, 0, dt)),
        compiler_params=pltpu.CompilerParams(
            dimension_semantics=("parallel", "parallel"),
            vmem_limit_bytes=vmem_limit),
    )(*args)
    return out.reshape(N, Cout, D, H, W)


# ----------------------------------------------------------------------------
# Forward wrapper (NCDHW in / NCDHW out) and deterministic parameter init.
# ----------------------------------------------------------------------------
def conv3d_block_forward(params, x_ncdhw, residual, depth_tile=None):
    """x: (N, Cin, D, H, W) float32 -> (N, Cout, D, H, W) float32."""
    x_bf = x_ncdhw.astype(jnp.bfloat16)            # cast once; reused for res
    h1 = conv3x3_bn_relu(x_bf, params['w1_oidhw'], params['b1'], params['bn1'],
                         out_dtype=jnp.bfloat16, depth_tile=depth_tile)
    res = (x_bf, params['wres_oidhw']) if residual else None
    out = conv3x3_bn_relu(h1, params['w2_oidhw'], params['b2'], params['bn2'],
                          out_dtype=jnp.float32, residual=res,
                          depth_tile=depth_tile)
    return out


def init_conv3d_block_params(key, inp_feat, out_feat, residual):
    ks = jax.random.split(key, 13)

    def conv_w(k, cin, cout, ksz):
        bound = 1.0 / jnp.sqrt(cin * ksz ** 3)
        return jax.random.uniform(k, (cout, cin, ksz, ksz, ksz), jnp.float32,
                                  -bound, bound)

    def conv_b(k, cin, cout, ksz):
        bound = 1.0 / jnp.sqrt(cin * ksz ** 3)
        return jax.random.uniform(k, (cout,), jnp.float32, -bound, bound)

    def bn_params(k0, k1, k2, k3, c):
        return dict(
            gamma=jax.random.uniform(k0, (c,), jnp.float32, 0.5, 1.5),
            beta=jax.random.normal(k1, (c,), jnp.float32) * 0.1,
            mean=jax.random.normal(k2, (c,), jnp.float32) * 0.1,
            var=jax.random.uniform(k3, (c,), jnp.float32, 0.5, 1.5))

    params = {
        'w1_oidhw': conv_w(ks[0], inp_feat, out_feat, 3),
        'b1': conv_b(ks[1], inp_feat, out_feat, 3),
        'bn1': bn_params(ks[2], ks[3], ks[4], ks[5], out_feat),
        'w2_oidhw': conv_w(ks[6], out_feat, out_feat, 3),
        'b2': conv_b(ks[7], out_feat, out_feat, 3),
        'bn2': bn_params(ks[8], ks[9], ks[10], ks[11], out_feat),
    }
    if residual:
        params['wres_oidhw'] = conv_w(ks[12], inp_feat, out_feat, 1)
    return params


# ----------------------------------------------------------------------------
# Pure-JAX reference (mirrors the PyTorch forward, eval-mode BN, f32 HIGHEST).
# ----------------------------------------------------------------------------
def reference_forward(params, x, residual):
    def c(v):
        return v.reshape(1, -1, 1, 1, 1)

    def block(x, w, b, bn):
        y = lax.conv_general_dilated(
            x, w, (1, 1, 1), [(1, 1)] * 3,
            dimension_numbers=('NCDHW', 'OIDHW', 'NCDHW'),
            precision=lax.Precision.HIGHEST)
        y = y + c(b)
        y = ((y - c(bn['mean'])) / jnp.sqrt(c(bn['var']) + BN_EPS)
             * c(bn['gamma']) + c(bn['beta']))
        return jnp.maximum(y, 0.0)

    h = block(x, params['w1_oidhw'], params['b1'], params['bn1'])
    out = block(h, params['w2_oidhw'], params['b2'], params['bn2'])
    if residual:
        out = out + lax.conv_general_dilated(
            x, params['wres_oidhw'], (1, 1, 1), [(0, 0)] * 3,
            dimension_numbers=('NCDHW', 'OIDHW', 'NCDHW'),
            precision=lax.Precision.HIGHEST)
    return out


if __name__ == "__main__":
    key = jax.random.PRNGKey(0)
    kx, kp = jax.random.split(key)

    N, Cin, Cout, D, H, W = 2, 4, 8, 8, 16, 16
    x = jax.random.normal(kx, (N, Cin, D, H, W), jnp.float32)

    configs = [
        (True, 4),      # residual path, depth-tiled -> exercises halo blocks
        (False, None),  # plain path, auto depth tile (TD == D, no halo blocks)
    ]
    for residual, depth_tile in configs:
        params = init_conv3d_block_params(kp, Cin, Cout, residual)
        out = conv3d_block_forward(params, x, residual, depth_tile=depth_tile)
        out = jax.block_until_ready(out)
        assert out.shape == (N, Cout, D, H, W)

        ref = reference_forward(params, x, residual)
        max_err = float(jnp.max(jnp.abs(out - ref)))
        ref_max = float(jnp.max(jnp.abs(ref)))
        # bf16 operands / bf16 h1 intermediate with f32 accumulation
        assert max_err <= 5e-2 * max(1.0, ref_max), (
            f"residual={residual}: mismatch vs reference "
            f"(max_err={max_err}, ref_max={ref_max})")

    print("KERNEL_OK")
</pallas_src>

<mosaic_0001>
module attributes {stable_mosaic.version = 11 : i64} {
  func.func @kernel(%arg0: i32, %arg1: i32, %arg2: memref<1x4x1024xbf16, #tpu.memory_space<vmem>>, %arg3: memref<1x4x256xbf16, #tpu.memory_space<vmem>>, %arg4: memref<1x4x256xbf16, #tpu.memory_space<vmem>>, %arg5: memref<8x108xbf16, #tpu.memory_space<vmem>>, %arg6: memref<8x1xf32, #tpu.memory_space<vmem>>, %arg7: memref<8x1024xbf16, #tpu.memory_space<vmem>>, %arg8: memref<1x8x1024xbf16, #tpu.memory_space<vmem>>) attributes {dimension_semantics = [#tpu.dimension_semantics<parallel>, #tpu.dimension_semantics<parallel>], iteration_bounds = array<i64: 2, 2>, scalar_prefetch = 0 : i64, scratch_operands = 0 : i64, tpu.core_type = #tpu.core_type<tc>, window_params = [{transform_indices = @transform_0, window_bounds = array<i64: 1, 4, 1024>}, {transform_indices = @transform_1, window_bounds = array<i64: 1, 4, 256>}, {transform_indices = @transform_2, window_bounds = array<i64: 1, 4, 256>}, {pipeline_mode = #tpu.pipeline_mode<synchronous>, transform_indices = @transform_3, window_bounds = array<i64: 8, 108>}, {pipeline_mode = #tpu.pipeline_mode<synchronous>, transform_indices = @transform_4, window_bounds = array<i64: 8, 1>}, {pipeline_mode = #tpu.pipeline_mode<synchronous>, transform_indices = @transform_5, window_bounds = array<i64: 8, 1024>}, {transform_indices = @transform_6, window_bounds = array<i64: 1, 8, 1024>}]} {
    %c4_i32 = arith.constant 4 : i32
    %0 = arith.muli %arg1, %c4_i32 : i32
    %c0 = arith.constant 0 : index
    %c0_0 = arith.constant 0 : index
    %c0_1 = arith.constant 0 : index
    %1 = vector.load %arg2[%c0, %c0_0, %c0_1] : memref<1x4x1024xbf16, #tpu.memory_space<vmem>>, vector<1x4x1024xbf16>
    %2 = vector.shape_cast %1 : vector<1x4x1024xbf16> to vector<4x1024xbf16>
    %c0_2 = arith.constant 0 : index
    %c0_3 = arith.constant 0 : index
    %c0_4 = arith.constant 0 : index
    %3 = vector.load %arg3[%c0_2, %c0_3, %c0_4] : memref<1x4x256xbf16, #tpu.memory_space<vmem>>, vector<1x4x256xbf16>
    %4 = vector.shape_cast %3 : vector<1x4x256xbf16> to vector<4x256xbf16>
    %c0_5 = arith.constant 0 : index
    %c0_6 = arith.constant 0 : index
    %c0_7 = arith.constant 0 : index
    %5 = vector.load %arg4[%c0_5, %c0_6, %c0_7] : memref<1x4x256xbf16, #tpu.memory_space<vmem>>, vector<1x4x256xbf16>
    %6 = vector.shape_cast %5 : vector<1x4x256xbf16> to vector<4x256xbf16>
    %c0_i32 = arith.constant 0 : i32
    %7 = arith.cmpi eq, %0, %c0_i32 : i32
    %cst = arith.constant 0.000000e+00 : bf16
    %8 = vector.broadcast %cst : bf16 to vector<4x256xbf16>
    %9 = arith.select %7, %8, %4 : vector<4x256xbf16>
    %c4_i32_8 = arith.constant 4 : i32
    %10 = arith.addi %0, %c4_i32_8 : i32
    %c8_i32 = arith.constant 8 : i32
    %11 = arith.cmpi eq, %10, %c8_i32 : i32
    %cst_9 = arith.constant 0.000000e+00 : bf16
    %12 = vector.broadcast %cst_9 : bf16 to vector<4x256xbf16>
    %13 = arith.select %11, %12, %6 : vector<4x256xbf16>
    %14 = vector.extract_strided_slice %2 {offsets = [0, 0], sizes = [4, 768], strides = [1, 1]} : vector<4x1024xbf16> to vector<4x768xbf16>
    %15 = tpu.concatenate %9, %14 in 1 : vector<4x256xbf16>, vector<4x768xbf16> -> vector<4x1024xbf16>
    %16 = vector.extract_strided_slice %2 {offsets = [0, 256], sizes = [4, 768], strides = [1, 1]} : vector<4x1024xbf16> to vector<4x768xbf16>
    %17 = tpu.concatenate %16, %13 in 1 : vector<4x768xbf16>, vector<4x256xbf16> -> vector<4x1024xbf16>
    %c0_10 = arith.constant 0 : index
    %c0_11 = arith.constant 0 : index
    %18 = vector.load %arg7[%c0_10, %c0_11] : memref<8x1024xbf16, #tpu.memory_space<vmem>>, vector<1x1024xbf16>
    %c1 = arith.constant 1 : index
    %c0_12 = arith.constant 0 : index
    %19 = vector.load %arg7[%c1, %c0_12] : memref<8x1024xbf16, #tpu.memory_space<vmem>>, vector<1x1024xbf16>
    %c2 = arith.constant 2 : index
    %c0_13 = arith.constant 0 : index
    %20 = vector.load %arg7[%c2, %c0_13] : memref<8x1024xbf16, #tpu.memory_space<vmem>>, vector<1x1024xbf16>
    %c3 = arith.constant 3 : index
    %c0_14 = arith.constant 0 : index
    %21 = vector.load %arg7[%c3, %c0_14] : memref<8x1024xbf16, #tpu.memory_space<vmem>>, vector<1x1024xbf16>
    %c4 = arith.constant 4 : index
    %c0_15 = arith.constant 0 : index
    %22 = vector.load %arg7[%c4, %c0_15] : memref<8x1024xbf16, #tpu.memory_space<vmem>>, vector<1x1024xbf16>
    %c5 = arith.constant 5 : index
    %c0_16 = arith.constant 0 : index
    %23 = vector.load %arg7[%c5, %c0_16] : memref<8x1024xbf16, #tpu.memory_space<vmem>>, vector<1x1024xbf16>
    %c6 = arith.constant 6 : index
    %c0_17 = arith.constant 0 : index
    %24 = vector.load %arg7[%c6, %c0_17] : memref<8x1024xbf16, #tpu.memory_space<vmem>>, vector<1x1024xbf16>
    %c7 = arith.constant 7 : index
    %c0_18 = arith.constant 0 : index
    %25 = vector.load %arg7[%c7, %c0_18] : memref<8x1024xbf16, #tpu.memory_space<vmem>>, vector<1x1024xbf16>
    %26 = vector.extract_strided_slice %15 {offsets = [0, 1007], sizes = [4, 17], strides = [1, 1]} : vector<4x1024xbf16> to vector<4x17xbf16>
    %27 = vector.extract_strided_slice %15 {offsets = [0, 0], sizes = [4, 1007], strides = [1, 1]} : vector<4x1024xbf16> to vector<4x1007xbf16>
    %28 = tpu.concatenate %26, %27 in 1 : vector<4x17xbf16>, vector<4x1007xbf16> -> vector<4x1024xbf16>
    %29 = vector.broadcast %18 : vector<1x1024xbf16> to vector<4x1024xbf16>
    %30 = arith.mulf %28, %29 : vector<4x1024xbf16>
    %31 = vector.extract_strided_slice %15 {offsets = [0, 1008], sizes = [4, 16], strides = [1, 1]} : vector<4x1024xbf16> to vector<4x16xbf16>
    %32 = vector.extract_strided_slice %15 {offsets = [0, 0], sizes = [4, 1008], strides = [1, 1]} : vector<4x1024xbf16> to vector<4x1008xbf16>
    %33 = tpu.concatenate %31, %32 in 1 : vector<4x16xbf16>, vector<4x1008xbf16> -> vector<4x1024xbf16>
    %34 = vector.broadcast %19 : vector<1x1024xbf16> to vector<4x1024xbf16>
    %35 = arith.mulf %33, %34 : vector<4x1024xbf16>
    %36 = vector.extract_strided_slice %15 {offsets = [0, 1009], sizes = [4, 15], strides = [1, 1]} : vector<4x1024xbf16> to vector<4x15xbf16>
    %37 = vector.extract_strided_slice %15 {offsets = [0, 0], sizes = [4, 1009], strides = [1, 1]} : vector<4x1024xbf16> to vector<4x1009xbf16>
    %38 = tpu.concatenate %36, %37 in 1 : vector<4x15xbf16>, vector<4x1009xbf16> -> vector<4x1024xbf16>
    %39 = vector.broadcast %20 : vector<1x1024xbf16> to vector<4x1024xbf16>
    %40 = arith.mulf %38, %39 : vector<4x1024xbf16>
    %41 = vector.extract_strided_slice %15 {offsets = [0, 1023], sizes = [4, 1], strides = [1, 1]} : vector<4x1024xbf16> to vector<4x1xbf16>
    %42 = vector.extract_strided_slice %15 {offsets = [0, 0], sizes = [4, 1023], strides = [1, 1]} : vector<4x1024xbf16> to vector<4x1023xbf16>
    %43 = tpu.concatenate %41, %42 in 1 : vector<4x1xbf16>, vector<4x1023xbf16> -> vector<4x1024xbf16>
    %44 = vector.broadcast %21 : vector<1x1024xbf16> to vector<4x1024xbf16>
    %45 = arith.mulf %43, %44 : vector<4x1024xbf16>
    %46 = vector.extract_strided_slice %15 {offsets = [0, 1], sizes = [4, 1023], strides = [1, 1]} : vector<4x1024xbf16> to vector<4x1023xbf16>
    %47 = vector.extract_strided_slice %15 {offsets = [0, 0], sizes = [4, 1], strides = [1, 1]} : vector<4x1024xbf16> to vector<4x1xbf16>
    %48 = tpu.concatenate %46, %47 in 1 : vector<4x1023xbf16>, vector<4x1xbf16> -> vector<4x1024xbf16>
    %49 = vector.broadcast %22 : vector<1x1024xbf16> to vector<4x1024xbf16>
    %50 = arith.mulf %48, %49 : vector<4x1024xbf16>
    %51 = vector.extract_strided_slice %15 {offsets = [0, 15], sizes = [4, 1009], strides = [1, 1]} : vector<4x1024xbf16> to vector<4x1009xbf16>
    %52 = vector.extract_strided_slice %15 {offsets = [0, 0], sizes = [4, 15], strides = [1, 1]} : vector<4x1024xbf16> to vector<4x15xbf16>
    %53 = tpu.concatenate %51, %52 in 1 : vector<4x1009xbf16>, vector<4x15xbf16> -> vector<4x1024xbf16>
    %54 = vector.broadcast %23 : vector<1x1024xbf16> to vector<4x1024xbf16>
    %55 = arith.mulf %53, %54 : vector<4x1024xbf16>
    %56 = vector.extract_strided_slice %15 {offsets = [0, 16], sizes = [4, 1008], strides = [1, 1]} : vector<4x1024xbf16> to vector<4x1008xbf16>
    %57 = vector.extract_strided_slice %15 {offsets = [0, 0], sizes = [4, 16], strides = [1, 1]} : vector<4x1024xbf16> to vector<4x16xbf16>
    %58 = tpu.concatenate %56, %57 in 1 : vector<4x1008xbf16>, vector<4x16xbf16> -> vector<4x1024xbf16>
    %59 = vector.broadcast %24 : vector<1x1024xbf16> to vector<4x1024xbf16>
    %60 = arith.mulf %58, %59 : vector<4x1024xbf16>
    %61 = vector.extract_strided_slice %15 {offsets = [0, 17], sizes = [4, 1007], strides = [1, 1]} : vector<4x1024xbf16> to vector<4x1007xbf16>
    %62 = vector.extract_strided_slice %15 {offsets = [0, 0], sizes = [4, 17], strides = [1, 1]} : vector<4x1024xbf16> to vector<4x17xbf16>
    %63 = tpu.concatenate %61, %62 in 1 : vector<4x1007xbf16>, vector<4x17xbf16> -> vector<4x1024xbf16>
    %64 = vector.broadcast %25 : vector<1x1024xbf16> to vector<4x1024xbf16>
    %65 = arith.mulf %63, %64 : vector<4x1024xbf16>
    %66 = vector.extract_strided_slice %2 {offsets = [0, 1007], sizes = [4, 17], strides = [1, 1]} : vector<4x1024xbf16> to vector<4x17xbf16>
    %67 = vector.extract_strided_slice %2 {offsets = [0, 0], sizes = [4, 1007], strides = [1, 1]} : vector<4x1024xbf16> to vector<4x1007xbf16>
    %68 = tpu.concatenate %66, %67 in 1 : vector<4x17xbf16>, vector<4x1007xbf16> -> vector<4x1024xbf16>
    %69 = vector.broadcast %18 : vector<1x1024xbf16> to vector<4x1024xbf16>
    %70 = arith.mulf %68, %69 : vector<4x1024xbf16>
    %71 = vector.extract_strided_slice %2 {offsets = [0, 1008], sizes = [4, 16], strides = [1, 1]} : vector<4x1024xbf16> to vector<4x16xbf16>
    %72 = vector.extract_strided_slice %2 {offsets = [0, 0], sizes = [4, 1008], strides = [1, 1]} : vector<4x1024xbf16> to vector<4x1008xbf16>
    %73 = tpu.concatenate %71, %72 in 1 : vector<4x16xbf16>, vector<4x1008xbf16> -> vector<4x1024xbf16>
    %74 = vector.broadcast %19 : vector<1x1024xbf16> to vector<4x1024xbf16>
    %75 = arith.mulf %73, %74 : vector<4x1024xbf16>
    %76 = vector.extract_strided_slice %2 {offsets = [0, 1009], sizes = [4, 15], strides = [1, 1]} : vector<4x1024xbf16> to vector<4x15xbf16>
    %77 = vector.extract_strided_slice %2 {offsets = [0, 0], sizes = [4, 1009], strides = [1, 1]} : vector<4x1024xbf16> to vector<4x1009xbf16>
    %78 = tpu.concatenate %76, %77 in 1 : vector<4x15xbf16>, vector<4x1009xbf16> -> vector<4x1024xbf16>
    %79 = vector.broadcast %20 : vector<1x1024xbf16> to vector<4x1024xbf16>
    %80 = arith.mulf %78, %79 : vector<4x1024xbf16>
    %81 = vector.extract_strided_slice %2 {offsets = [0, 1023], sizes = [4, 1], strides = [1, 1]} : vector<4x1024xbf16> to vector<4x1xbf16>
    %82 = vector.extract_strided_slice %2 {offsets = [0, 0], sizes = [4, 1023], strides = [1, 1]} : vector<4x1024xbf16> to vector<4x1023xbf16>
    %83 = tpu.concatenate %81, %82 in 1 : vector<4x1xbf16>, vector<4x1023xbf16> -> vector<4x1024xbf16>
    %84 = vector.broadcast %21 : vector<1x1024xbf16> to vector<4x1024xbf16>
    %85 = arith.mulf %83, %84 : vector<4x1024xbf16>
    %86 = vector.extract_strided_slice %2 {offsets = [0, 1], sizes = [4, 1023], strides = [1, 1]} : vector<4x1024xbf16> to vector<4x1023xbf16>
    %87 = vector.extract_strided_slice %2 {offsets = [0, 0], sizes = [4, 1], strides = [1, 1]} : vector<4x1024xbf16> to vector<4x1xbf16>
    %88 = tpu.concatenate %86, %87 in 1 : vector<4x1023xbf16>, vector<4x1xbf16> -> vector<4x1024xbf16>
    %89 = vector.broadcast %22 : vector<1x1024xbf16> to vector<4x1024xbf16>
    %90 = arith.mulf %88, %89 : vector<4x1024xbf16>
    %91 = vector.extract_strided_slice %2 {offsets = [0, 15], sizes = [4, 1009], strides = [1, 1]} : vector<4x1024xbf16> to vector<4x1009xbf16>
    %92 = vector.extract_strided_slice %2 {offsets = [0, 0], sizes = [4, 15], strides = [1, 1]} : vector<4x1024xbf16> to vector<4x15xbf16>
    %93 = tpu.concatenate %91, %92 in 1 : vector<4x1009xbf16>, vector<4x15xbf16> -> vector<4x1024xbf16>
    %94 = vector.broadcast %23 : vector<1x1024xbf16> to vector<4x1024xbf16>
    %95 = arith.mulf %93, %94 : vector<4x1024xbf16>
    %96 = vector.extract_strided_slice %2 {offsets = [0, 16], sizes = [4, 1008], strides = [1, 1]} : vector<4x1024xbf16> to vector<4x1008xbf16>
    %97 = vector.extract_strided_slice %2 {offsets = [0, 0], sizes = [4, 16], strides = [1, 1]} : vector<4x1024xbf16> to vector<4x16xbf16>
    %98 = tpu.concatenate %96, %97 in 1 : vector<4x1008xbf16>, vector<4x16xbf16> -> vector<4x1024xbf16>
    %99 = vector.broadcast %24 : vector<1x1024xbf16> to vector<4x1024xbf16>
    %100 = arith.mulf %98, %99 : vector<4x1024xbf16>
    %101 = vector.extract_strided_slice %2 {offsets = [0, 17], sizes = [4, 1007], strides = [1, 1]} : vector<4x1024xbf16> to vector<4x1007xbf16>
    %102 = vector.extract_strided_slice %2 {offsets = [0, 0], sizes = [4, 17], strides = [1, 1]} : vector<4x1024xbf16> to vector<4x17xbf16>
    %103 = tpu.concatenate %101, %102 in 1 : vector<4x1007xbf16>, vector<4x17xbf16> -> vector<4x1024xbf16>
    %104 = vector.broadcast %25 : vector<1x1024xbf16> to vector<4x1024xbf16>
    %105 = arith.mulf %103, %104 : vector<4x1024xbf16>
    %106 = vector.extract_strided_slice %17 {offsets = [0, 1007], sizes = [4, 17], strides = [1, 1]} : vector<4x1024xbf16> to vector<4x17xbf16>
    %107 = vector.extract_strided_slice %17 {offsets = [0, 0], sizes = [4, 1007], strides = [1, 1]} : vector<4x1024xbf16> to vector<4x1007xbf16>
    %108 = tpu.concatenate %106, %107 in 1 : vector<4x17xbf16>, vector<4x1007xbf16> -> vector<4x1024xbf16>
    %109 = vector.broadcast %18 : vector<1x1024xbf16> to vector<4x1024xbf16>
    %110 = arith.mulf %108, %109 : vector<4x1024xbf16>
    %111 = vector.extract_strided_slice %17 {offsets = [0, 1008], sizes = [4, 16], strides = [1, 1]} : vector<4x1024xbf16> to vector<4x16xbf16>
    %112 = vector.extract_strided_slice %17 {offsets = [0, 0], sizes = [4, 1008], strides = [1, 1]} : vector<4x1024xbf16> to vector<4x1008xbf16>
    %113 = tpu.concatenate %111, %112 in 1 : vector<4x16xbf16>, vector<4x1008xbf16> -> vector<4x1024xbf16>
    %114 = vector.broadcast %19 : vector<1x1024xbf16> to vector<4x1024xbf16>
    %115 = arith.mulf %113, %114 : vector<4x1024xbf16>
    %116 = vector.extract_strided_slice %17 {offsets = [0, 1009], sizes = [4, 15], strides = [1, 1]} : vector<4x1024xbf16> to vector<4x15xbf16>
    %117 = vector.extract_strided_slice %17 {offsets = [0, 0], sizes = [4, 1009], strides = [1, 1]} : vector<4x1024xbf16> to vector<4x1009xbf16>
    %118 = tpu.concatenate %116, %117 in 1 : vector<4x15xbf16>, vector<4x1009xbf16> -> vector<4x1024xbf16>
    %119 = vector.broadcast %20 : vector<1x1024xbf16> to vector<4x1024xbf16>
    %120 = arith.mulf %118, %119 : vector<4x1024xbf16>
    %121 = vector.extract_strided_slice %17 {offsets = [0, 1023], sizes = [4, 1], strides = [1, 1]} : vector<4x1024xbf16> to vector<4x1xbf16>
    %122 = vector.extract_strided_slice %17 {offsets = [0, 0], sizes = [4, 1023], strides = [1, 1]} : vector<4x1024xbf16> to vector<4x1023xbf16>
    %123 = tpu.concatenate %121, %122 in 1 : vector<4x1xbf16>, vector<4x1023xbf16> -> vector<4x1024xbf16>
    %124 = vector.broadcast %21 : vector<1x1024xbf16> to vector<4x1024xbf16>
    %125 = arith.mulf %123, %124 : vector<4x1024xbf16>
    %126 = vector.extract_strided_slice %17 {offsets = [0, 1], sizes = [4, 1023], strides = [1, 1]} : vector<4x1024xbf16> to vector<4x1023xbf16>
    %127 = vector.extract_strided_slice %17 {offsets = [0, 0], sizes = [4, 1], strides = [1, 1]} : vector<4x1024xbf16> to vector<4x1xbf16>
    %128 = tpu.concatenate %126, %127 in 1 : vector<4x1023xbf16>, vector<4x1xbf16> -> vector<4x1024xbf16>
    %129 = vector.broadcast %22 : vector<1x1024xbf16> to vector<4x1024xbf16>
    %130 = arith.mulf %128, %129 : vector<4x1024xbf16>
    %131 = vector.extract_strided_slice %17 {offsets = [0, 15], sizes = [4, 1009], strides = [1, 1]} : vector<4x1024xbf16> to vector<4x1009xbf16>
    %132 = vector.extract_strided_slice %17 {offsets = [0, 0], sizes = [4, 15], strides = [1, 1]} : vector<4x1024xbf16> to vector<4x15xbf16>
    %133 = tpu.concatenate %131, %132 in 1 : vector<4x1009xbf16>, vector<4x15xbf16> -> vector<4x1024xbf16>
    %134 = vector.broadcast %23 : vector<1x1024xbf16> to vector<4x1024xbf16>
    %135 = arith.mulf %133, %134 : vector<4x1024xbf16>
    %136 = vector.extract_strided_slice %17 {offsets = [0, 16], sizes = [4, 1008], strides = [1, 1]} : vector<4x1024xbf16> to vector<4x1008xbf16>
    %137 = vector.extract_strided_slice %17 {offsets = [0, 0], sizes = [4, 16], strides = [1, 1]} : vector<4x1024xbf16> to vector<4x16xbf16>
    %138 = tpu.concatenate %136, %137 in 1 : vector<4x1008xbf16>, vector<4x16xbf16> -> vector<4x1024xbf16>
    %139 = vector.broadcast %24 : vector<1x1024xbf16> to vector<4x1024xbf16>
    %140 = arith.mulf %138, %139 : vector<4x1024xbf16>
    %141 = vector.extract_strided_slice %17 {offsets = [0, 17], sizes = [4, 1007], strides = [1, 1]} : vector<4x1024xbf16> to vector<4x1007xbf16>
    %142 = vector.extract_strided_slice %17 {offsets = [0, 0], sizes = [4, 17], strides = [1, 1]} : vector<4x1024xbf16> to vector<4x17xbf16>
    %143 = tpu.concatenate %141, %142 in 1 : vector<4x1007xbf16>, vector<4x17xbf16> -> vector<4x1024xbf16>
    %144 = vector.broadcast %25 : vector<1x1024xbf16> to vector<4x1024xbf16>
    %145 = arith.mulf %143, %144 : vector<4x1024xbf16>
    %146 = tpu.concatenate %30, %35, %40, %45, %15, %50, %55, %60, %65, %70, %75, %80, %85, %2, %90, %95 in 0 : vector<4x1024xbf16>, vector<4x1024xbf16>, vector<4x1024xbf16>, vector<4x1024xbf16>, vector<4x1024xbf16>, vector<4x1024xbf16>, vector<4x1024xbf16>, vector<4x1024xbf16>, vector<4x1024xbf16>, vector<4x1024xbf16>, vector<4x1024xbf16>, vector<4x1024xbf16>, vector<4x1024xbf16>, vector<4x1024xbf16>, vector<4x1024xbf16>, vector<4x1024xbf16> -> vector<64x1024xbf16>
    %147 = tpu.concatenate %100, %105, %110, %115, %120, %125, %17, %130, %135, %140, %145 in 0 : vector<4x1024xbf16>, vector<4x1024xbf16>, vector<4x1024xbf16>, vector<4x1024xbf16>, vector<4x1024xbf16>, vector<4x1024xbf16>, vector<4x1024xbf16>, vector<4x1024xbf16>, vector<4x1024xbf16>, vector<4x1024xbf16>, vector<4x1024xbf16> -> vector<44x1024xbf16>
    %148 = tpu.concatenate %146, %147 in 0 : vector<64x1024xbf16>, vector<44x1024xbf16> -> vector<108x1024xbf16>
    %c0_19 = arith.constant 0 : index
    %c0_20 = arith.constant 0 : index
    %149 = vector.load %arg5[%c0_19, %c0_20] : memref<8x108xbf16, #tpu.memory_space<vmem>>, vector<8x108xbf16>
    %cst_21 = arith.constant dense<0.000000e+00> : vector<8x1024xf32>
    %150 = tpu.matmul %149, %148, %cst_21 {dimension_numbers = #tpu.dot_dimension_numbers<[1], [0], [0], [1], [0, 0, 1, 1], [], []>} : vector<8x108xbf16>, vector<108x1024xbf16>, vector<8x1024xf32> -> vector<8x1024xf32>
    %c0_22 = arith.constant 0 : index
    %c0_23 = arith.constant 0 : index
    %151 = vector.load %arg6[%c0_22, %c0_23] : memref<8x1xf32, #tpu.memory_space<vmem>>, vector<8x1xf32>
    %152 = vector.broadcast %151 : vector<8x1xf32> to vector<8x1024xf32>
    %153 = arith.addf %150, %152 : vector<8x1024xf32>
    %cst_24 = arith.constant 0.000000e+00 : f32
    %154 = vector.broadcast %cst_24 : f32 to vector<8x1024xf32>
    %155 = arith.maximumf %153, %154 : vector<8x1024xf32>
    %156 = arith.truncf %155 : vector<8x1024xf32> to vector<8x1024xbf16>
    %c0_25 = arith.constant 0 : index
    %c0_26 = arith.constant 0 : index
    %c0_27 = arith.constant 0 : index
    %157 = vector.load %arg8[%c0_25, %c0_26, %c0_27] : memref<1x8x1024xbf16, #tpu.memory_space<vmem>>, vector<1x8x1024xbf16>
    %158 = vector.shape_cast %157 : vector<1x8x1024xbf16> to vector<8x1024xbf16>
    %159 = vector.shape_cast %156 : vector<8x1024xbf16> to vector<1x8x1024xbf16>
    tpu.vector_store %arg8[%c0_25, %c0_26, %c0_27], %159 {strides = array<i32>} : memref<1x8x1024xbf16, #tpu.memory_space<vmem>>, vector<1x8x1024xbf16>,
    return
  }
  func.func @transform_0(%arg0: i32, %arg1: i32) -> (i32, i32, i32) {
    %c0_i32 = arith.constant 0 : i32
    %c0_i32_0 = arith.constant 0 : i32
    return %arg0, %c0_i32, %arg1 : i32, i32, i32
  }
  func.func @transform_1(%arg0: i32, %arg1: i32) -> (i32, i32, i32) {
    %c4_i32 = arith.constant 4 : i32
    %0 = arith.muli %arg1, %c4_i32 : i32
    %c1_i32 = arith.constant 1 : i32
    %1 = arith.subi %0, %c1_i32 : i32
    %c0_i32 = arith.constant 0 : i32
    %2 = arith.maxsi %1, %c0_i32 : i32
    %c0_i32_0 = arith.constant 0 : i32
    %c0_i32_1 = arith.constant 0 : i32
    return %arg0, %c0_i32_0, %2 : i32, i32, i32
  }
  func.func @transform_2(%arg0: i32, %arg1: i32) -> (i32, i32, i32) {
    %c4_i32 = arith.constant 4 : i32
    %0 = arith.muli %arg1, %c4_i32 : i32
    %c4_i32_0 = arith.constant 4 : i32
    %1 = arith.addi %0, %c4_i32_0 : i32
    %c7_i32 = arith.constant 7 : i32
    %2 = arith.minsi %1, %c7_i32 : i32
    %c0_i32 = arith.constant 0 : i32
    %c0_i32_1 = arith.constant 0 : i32
    return %arg0, %c0_i32, %2 : i32, i32, i32
  }
  func.func @transform_3(%arg0: i32, %arg1: i32) -> (i32, i32) {
    %c0_i32 = arith.constant 0 : i32
    %c0_i32_0 = arith.constant 0 : i32
    %c0_i32_1 = arith.constant 0 : i32
    return %c0_i32, %c0_i32_0 : i32, i32
  }
  func.func @transform_4(%arg0: i32, %arg1: i32) -> (i32, i32) {
    %c0_i32 = arith.constant 0 : i32
    %c0_i32_0 = arith.constant 0 : i32
    %c0_i32_1 = arith.constant 0 : i32
    return %c0_i32, %c0_i32_0 : i32, i32
  }
  func.func @transform_5(%arg0: i32, %arg1: i32) -> (i32, i32) {
    %c0_i32 = arith.constant 0 : i32
    %c0_i32_0 = arith.constant 0 : i32
    %c0_i32_1 = arith.constant 0 : i32
    return %c0_i32, %c0_i32_0 : i32, i32
  }
  func.func @transform_6(%arg0: i32, %arg1: i32) -> (i32, i32, i32) {
    %c0_i32 = arith.constant 0 : i32
    %c0_i32_0 = arith.constant 0 : i32
    return %arg0, %c0_i32, %arg1 : i32, i32, i32
  }
}

</mosaic_0001>

<llo_original>
// kernel: tpu_custom_call.1
$region0: #{tpu_custom_call.1}
  #allocation0 [shape = 'u32[]', space=smem, size = 0x4, offset = 0x4, fixed_abs, tag = 'smem constant byte address 0x4 - core index']
  #allocation1 [shape = 'u32[144,128]{1,0:T(1,128)}', space=vmem, size = 0x12000, scoped, tag = 'internal scratch']
  %s0 = inlined_call_operand.hbm [shape: bf16[2,4,2048], index: 0, kind: input, shape index: {}]
  %s1 = inlined_call_operand.hbm [shape: bf16[2,4,2048], index: 1, kind: input, shape index: {}]
  %s2 = inlined_call_operand.hbm [shape: bf16[2,4,2048], index: 2, kind: input, shape index: {}]
  %s3 = inlined_call_operand.vmem [shape: bf16[8,108], index: 3, kind: input, shape index: {}]
  %s4 = inlined_call_operand.vmem [shape: f32[8,1], index: 4, kind: input, shape index: {}]
  %s5 = inlined_call_operand.hbm [shape: bf16[8,1024], index: 5, kind: input, shape index: {}]
  %s6 = inlined_call_operand.hbm [shape: bf16[2,8,2048], index: 6, kind: output, shape index: {}]
  %s7 = sld [smem:[#allocation0]]
  $region73: #{tpu_custom_call.1} parent=0
    _
  %s9 = ssub.s32 1, %s7
  %s10 = scalar_select 0, %s9, %s7
  $region1: #{tpu_custom_call.1} parent=0
    #allocation2 [shape = 'u8[16384]{0}', space=vmem, size = 0x4000, scoped, tag = 'input window, operand 0']
    #allocation3 [shape = 's32[2]{0}', space=sflag, size = 0x8, scoped, tag = 'scoped memory for tpu_custom_call.1']
    #allocation4 [shape = 's32[2]{0}', space=sflag, size = 0x8, scoped, tag = 'scoped memory for tpu_custom_call.1']
    #allocation5 [shape = 'u8[4096]{0}', space=vmem, size = 0x1000, scoped, tag = 'input window, operand 1']
    #allocation6 [shape = 's32[2]{0}', space=sflag, size = 0x8, scoped, tag = 'scoped memory for tpu_custom_call.1']
    #allocation7 [shape = 'u8[4096]{0}', space=vmem, size = 0x1000, scoped, tag = 'input window, operand 2']
    #allocation8 [shape = 'u8[16384]{0}', space=vmem, size = 0x4000, scoped, tag = 'input window, operand 5, single buffered']
    #allocation9 [shape = 's32[1]{0}', space=sflag, size = 0x4, scoped, tag = 'scoped memory for tpu_custom_call.1']
    #allocation10 [shape = 'u8[32768]{0}', space=vmem, size = 0x8000, scoped, tag = 'output window, operand 0']
    %11 = vsyncpa [#allocation3], 0
    %s12 = scalar_lea.sflag [#allocation3], 1
    %13 = vsyncpa %s12, 0
    %14 = vsyncpa [#allocation6], 0
    %s15 = scalar_lea.sflag [#allocation6], 1
    %16 = vsyncpa %s15, 0
    %17 = vsyncpa [#allocation9], 0
    %18 = vsyncpa [#allocation4], 0
    %s19 = scalar_lea.sflag [#allocation4], 1
    %20 = vsyncpa %s19, 0
    loop: start=0, step=1, limit=6
    $region2: #{tpu_custom_call.1} parent=1 // loop_pre_header
      _
    $region3: #{tpu_custom_call.1} parent=1 // loop_header
      %s22 = sphi 0, %s26
      %p23 = scmp.ge.s32.totalorder %s22, 6
      %s29 = sphi 0, %s41
      %s30 = sphi 0, %s37
      %s31 = sphi 0, %s29
      %s32 = sphi 0, %s30
      %s33 = sphi 0, %s31
      %s34 = sphi 0, %s32
      %s46 = sphi 0, %s48
      %s49 = sphi 0, %s46
      %s50 = sphi 0, %s49
      %s66 = sphi 0, %s50
      %s82 = sphi 0, %s84
      %s85 = sphi 0, %s82
      %s86 = sphi 0, %s85
      %s102 = sphi 0, %s86
      %s118 = sphi 0, %s120
      %s121 = sphi 0, %s118
      %s122 = sphi 0, %s121
      %s138 = sphi 0, %s122
      %s142 = sphi 0, %s142
      %s144 = sphi 0, %s142
      %s145 = sphi 0, %s144
      %s159 = sphi 0, %s145
      %s163 = sphi 0, %s163
      %s165 = sphi 0, %s163
      %s166 = sphi 0, %s165
      %s180 = sphi 0, %s166
      %s184 = sphi 0, %s184
      %s186 = sphi 0, %s184
      %s187 = sphi 0, %s186
      %s201 = sphi 0, %s187
      %s209 = sphi 0, %s211
      %s212 = sphi 0, %s209
      %s213 = sphi 0, %s212
      %s229 = sphi 0, %s213
    $region4: #{tpu_custom_call.1} parent=1 // loop_header_branch
      %25 = sbr.rel (%p23) target = $region8
    $region5: #{tpu_custom_call.1} parent=1 // loop_body
      %s27 = ssub.s32 %s22, 1
      %s28 = ssub.s32 %s22, 2
      %s35 = sadd.s32 1, %s30
      %p36 = scmp.ge.s32.totalorder %s35, 2
      %s37 = scalar_select %p36, 0, %s35
      %s38 = sadd.s32 1, %s29
      %s39 = scalar_select %p36, %s38, %s29
      %p40 = scmp.ge.s32.totalorder %s39, 2
      %s41 = scalar_select %p40, 0, %s39
      %s42 = ssub.s32 %s29, %s41
      %s43 = ssub.s32 %s30, %s37
      %s44 = sor.u32 %s42, %s43
      %p45 = scmp.eq.s32.totalorder %s44, 0
      %s47 = sadd.s32 %s46, 1
      %s48 = scalar_select %p45, %s46, %s47
      %p51 = pneg %p45
      %p52 = scmp.eq.s32.totalorder %s22, 3
      %p53 = por %p51, %p52
      %p54 = scmp.ne.s32.totalorder %s46, %s49
      %p55 = scmp.eq.s32.totalorder %s22, 0
      %p56 = por %p54, %p55
      %p57 = scmp.ne.s32.totalorder %s46, %s49
      %p58 = scmp.eq.s32.totalorder %s27, 3
      %p59 = por %p57, %p58
      %p60 = scmp.ne.s32.totalorder %s49, %s50
      %p61 = scmp.eq.s32.totalorder %s27, 0
      %p62 = por %p60, %p61
      %p63 = scmp.ne.s32.totalorder %s49, %s50
      %p64 = scmp.eq.s32.totalorder %s28, 3
      %p65 = por %p63, %p64
      %p67 = scmp.ne.s32.totalorder %s50, %s66
      %p68 = scmp.eq.s32.totalorder %s28, 0
      %p69 = por %p67, %p68
      %s70 = smul.u32 %s30, 4
      %s71 = ssub.s32 %s70, 1
      %p72 = scmp.gt.s32.totalorder %s71, 0
      %s73 = scalar_select %p72, %s71, 0
      %s74 = smul.u32 %s37, 4
      %s75 = ssub.s32 %s74, 1
      %p76 = scmp.gt.s32.totalorder %s75, 0
      %s77 = scalar_select %p76, %s75, 0
      %s78 = ssub.s32 %s29, %s41
      %s79 = ssub.s32 %s73, %s77
      %s80 = sor.u32 %s78, %s79
      %p81 = scmp.eq.s32.totalorder %s80, 0
      %s83 = sadd.s32 %s82, 1
      %s84 = scalar_select %p81, %s82, %s83
      %p87 = pneg %p81
      %p88 = scmp.eq.s32.totalorder %s22, 3
      %p89 = por %p87, %p88
      %p90 = scmp.ne.s32.totalorder %s82, %s85
      %p91 = scmp.eq.s32.totalorder %s22, 0
      %p92 = por %p90, %p91
      %p93 = scmp.ne.s32.totalorder %s82, %s85
      %p94 = scmp.eq.s32.totalorder %s27, 3
      %p95 = por %p93, %p94
      %p96 = scmp.ne.s32.totalorder %s85, %s86
      %p97 = scmp.eq.s32.totalorder %s27, 0
      %p98 = por %p96, %p97
      %p99 = scmp.ne.s32.totalorder %s85, %s86
      %p100 = scmp.eq.s32.totalorder %s28, 3
      %p101 = por %p99, %p100
      %p103 = scmp.ne.s32.totalorder %s86, %s102
      %p104 = scmp.eq.s32.totalorder %s28, 0
      %p105 = por %p103, %p104
      %s106 = smul.u32 %s30, 4
      %s107 = sadd.s32 %s106, 4
      %p108 = scmp.lt.s32.totalorder %s107, 7
      %s109 = scalar_select %p108, %s107, 7
      %s110 = smul.u32 %s37, 4
      %s111 = sadd.s32 %s110, 4
      %p112 = scmp.lt.s32.totalorder %s111, 7
      %s113 = scalar_select %p112, %s111, 7
      %s114 = ssub.s32 %s29, %s41
      %s115 = ssub.s32 %s109, %s113
      %s116 = sor.u32 %s114, %s115
      %p117 = scmp.eq.s32.totalorder %s116, 0
      %s119 = sadd.s32 %s118, 1
      %s120 = scalar_select %p117, %s118, %s119
      %p123 = pneg %p117
      %p124 = scmp.eq.s32.totalorder %s22, 3
      %p125 = por %p123, %p124
      %p126 = scmp.ne.s32.totalorder %s118, %s121
      %p127 = scmp.eq.s32.totalorder %s22, 0
      %p128 = por %p126, %p127
      %p129 = scmp.ne.s32.totalorder %s118, %s121
      %p130 = scmp.eq.s32.totalorder %s27, 3
      %p131 = por %p129, %p130
      %p132 = scmp.ne.s32.totalorder %s121, %s122
      %p133 = scmp.eq.s32.totalorder %s27, 0
      %p134 = por %p132, %p133
      %p135 = scmp.ne.s32.totalorder %s121, %s122
      %p136 = scmp.eq.s32.totalorder %s28, 3
      %p137 = por %p135, %p136
      %p139 = scmp.ne.s32.totalorder %s122, %s138
      %p140 = scmp.eq.s32.totalorder %s28, 0
      %p141 = por %p139, %p140
      %s143 = sadd.s32 %s142, 1
      %p146 = scmp.eq.s32.totalorder %s22, 3
      %p147 = scmp.ne.s32.totalorder %s142, %s144
      %p148 = scmp.eq.s32.totalorder %s22, 0
      %p149 = por %p147, %p148
      %p150 = scmp.ne.s32.totalorder %s142, %s144
      %p151 = scmp.eq.s32.totalorder %s27, 3
      %p152 = por %p150, %p151
      %p153 = scmp.ne.s32.totalorder %s144, %s145
      %p154 = scmp.eq.s32.totalorder %s27, 0
      %p155 = por %p153, %p154
      %p156 = scmp.ne.s32.totalorder %s144, %s145
      %p157 = scmp.eq.s32.totalorder %s28, 3
      %p158 = por %p156, %p157
      %p160 = scmp.ne.s32.totalorder %s145, %s159
      %p161 = scmp.eq.s32.totalorder %s28, 0
      %p162 = por %p160, %p161
      %s164 = sadd.s32 %s163, 1
      %p167 = scmp.eq.s32.totalorder %s22, 3
      %p168 = scmp.ne.s32.totalorder %s163, %s165
      %p169 = scmp.eq.s32.totalorder %s22, 0
      %p170 = por %p168, %p169
      %p171 = scmp.ne.s32.totalorder %s163, %s165
      %p172 = scmp.eq.s32.totalorder %s27, 3
      %p173 = por %p171, %p172
      %p174 = scmp.ne.s32.totalorder %s165, %s166
      %p175 = scmp.eq.s32.totalorder %s27, 0
      %p176 = por %p174, %p175
      %p177 = scmp.ne.s32.totalorder %s165, %s166
      %p178 = scmp.eq.s32.totalorder %s28, 3
      %p179 = por %p177, %p178
      %p181 = scmp.ne.s32.totalorder %s166, %s180
      %p182 = scmp.eq.s32.totalorder %s28, 0
      %p183 = por %p181, %p182
      %s185 = sadd.s32 %s184, 1
      %p188 = scmp.eq.s32.totalorder %s22, 3
      %p189 = scmp.ne.s32.totalorder %s184, %s186
      %p190 = scmp.eq.s32.totalorder %s22, 0
      %p191 = por %p189, %p190
      %p192 = scmp.ne.s32.totalorder %s184, %s186
      %p193 = scmp.eq.s32.totalorder %s27, 3
      %p194 = por %p192, %p193
      %p195 = scmp.ne.s32.totalorder %s186, %s187
      %p196 = scmp.eq.s32.totalorder %s27, 0
      %p197 = por %p195, %p196
      %p198 = scmp.ne.s32.totalorder %s186, %s187
      %p199 = scmp.eq.s32.totalorder %s28, 3
      %p200 = por %p198, %p199
      %p202 = scmp.ne.s32.totalorder %s187, %s201
      %p203 = scmp.eq.s32.totalorder %s28, 0
      %p204 = por %p202, %p203
      %s205 = ssub.s32 %s29, %s41
      %s206 = ssub.s32 %s30, %s37
      %s207 = sor.u32 %s205, %s206
      %p208 = scmp.eq.s32.totalorder %s207, 0
      %s210 = sadd.s32 %s209, 1
      %s211 = scalar_select %p208, %s209, %s210
      %p214 = pneg %p208
      %p215 = scmp.eq.s32.totalorder %s22, 3
      %p216 = por %p214, %p215
      %p217 = scmp.ne.s32.totalorder %s209, %s212
      %p218 = scmp.eq.s32.totalorder %s22, 0
      %p219 = por %p217, %p218
      %p220 = scmp.ne.s32.totalorder %s209, %s212
      %p221 = scmp.eq.s32.totalorder %s27, 3
      %p222 = por %p220, %p221
      %p223 = scmp.ne.s32.totalorder %s212, %s213
      %p224 = scmp.eq.s32.totalorder %s27, 0
      %p225 = por %p223, %p224
      %p226 = scmp.ne.s32.totalorder %s212, %s213
      %p227 = scmp.eq.s32.totalorder %s28, 3
      %p228 = por %p226, %p227
      %p230 = scmp.ne.s32.totalorder %s213, %s229
      %p231 = scmp.eq.s32.totalorder %s28, 0
      %p232 = por %p230, %p231
      %p233 = scmp.le.s32.totalorder 1, %s22
      %p234 = scmp.lt.s32.totalorder %s22, 5
      %p235 = pnand %p233, %p234
      %p236 = pneg %p235
      // Predicated region
      $region9: #{tpu_custom_call.1} parent=5 // pred_check
        _
      $region10: #{tpu_custom_call.1} parent=5 // pred_check_branch
        %238 = sbr.rel (%p235) target = $region12
      $region11: #{tpu_custom_call.1} parent=5 // pred_region
        %s239 = ssub.s32 %s22, 1
        // Predicated region
        $region13: #{tpu_custom_call.1} parent=11 // pred_check
          %p240 = pneg %p155
        $region14: #{tpu_custom_call.1} parent=11 // pred_check_branch
          %242 = sbr.rel (%p240) target = $region16
        $region15: #{tpu_custom_call.1} parent=11 // pred_region
          _
        $region16: #{tpu_custom_call.1} parent=11 // pred_fallthru
          _
        // Predicated region
        $region17: #{tpu_custom_call.1} parent=11 // pred_check
          %p243 = pneg %p176
        $region18: #{tpu_custom_call.1} parent=11 // pred_check_branch
          %245 = sbr.rel (%p243) target = $region20
        $region19: #{tpu_custom_call.1} parent=11 // pred_region
          _
        $region20: #{tpu_custom_call.1} parent=11 // pred_fallthru
          _
        // Predicated region
        $region21: #{tpu_custom_call.1} parent=11 // pred_check
          %p246 = pneg %p197
        $region22: #{tpu_custom_call.1} parent=11 // pred_check_branch
          %248 = sbr.rel (%p246) target = $region24
        $region23: #{tpu_custom_call.1} parent=11 // pred_region
          %s250 = ssub.s32 512, 512
          %251 = vsyncadd [#allocation9], %s250
          %s253 = sshll.u32 [#allocation8], 4
          %s254 = int_to_ptr.vmem [resolvable:$true] %s253
          %256 = dma.hbm_to_vmem [thread:$0]  %s5, 512, %s254, [#allocation9]
        $region24: #{tpu_custom_call.1} parent=11 // pred_fallthru
          _
      $region12: #{tpu_custom_call.1} parent=5 // pred_fallthru
        _
      %p257 = scmp.lt.s32.totalorder %s22, 4
      // Predicated region
      $region25: #{tpu_custom_call.1} parent=5 // pred_check
        %p258 = pneg %p257
      $region26: #{tpu_custom_call.1} parent=5 // pred_check_branch
        %260 = sbr.rel (%p258) target = $region28
      $region27: #{tpu_custom_call.1} parent=5 // pred_region
        // Predicated region
        $region29: #{tpu_custom_call.1} parent=27 // pred_check
          %p261 = pneg %p56
        $region30: #{tpu_custom_call.1} parent=27 // pred_check_branch
          %263 = sbr.rel (%p261) target = $region32
        $region31: #{tpu_custom_call.1} parent=27 // pred_region
          %s264 = sand.u32 %s46, 1
          %s265 = scalar_lea.sflag [#allocation3], %s264
          %s266 = sand.u32 %s46, 1
          %s267 = smul.addr %s266, 16
          %s268 = scalar_lea.vmem [#allocation2], %s267
          %s269 = smul.u32 8, %s30
          %s271 = ssub.s32 256, 256
          %272 = vsyncadd %s265, %s271
          %s273 = smul.addr %s29, 16
          %s274 = sadd.s32 %s269, %s273
          %s275 = smul.addr %s274, 32
          %s276 = scalar_lea.hbm %s0, %s275
          %s278 = sshll.u32 %s268, 4
          %s279 = int_to_ptr.vmem [resolvable:$true] %s278
          %281 = dma.hbm_to_vmem [thread:$0]  %s276, 256, %s279, %s265
        $region32: #{tpu_custom_call.1} parent=27 // pred_fallthru
          _
        // Predicated region
        $region33: #{tpu_custom_call.1} parent=27 // pred_check
          %p282 = pneg %p92
        $region34: #{tpu_custom_call.1} parent=27 // pred_check_branch
          %284 = sbr.rel (%p282) target = $region36
        $region35: #{tpu_custom_call.1} parent=27 // pred_region
          %s285 = sand.u32 %s22, 1
          %s286 = scalar_lea.sflag [#allocation6], %s285
          %s287 = sand.u32 %s82, 1
          %s288 = smul.addr %s287, 4
          %s289 = scalar_lea.vmem [#allocation5], %s288
          %s290 = smul.u32 %s30, 4
          %s291 = ssub.s32 %s290, 1
          %p292 = scmp.gt.s32.totalorder %s291, 0
          %s293 = scalar_select %p292, %s291, 0
          %s294 = smul.u32 2, %s293
          %s296 = ssub.s32 64, 64
          %297 = vsyncadd %s286, %s296
          %s298 = smul.addr %s29, 16
          %s299 = sadd.s32 %s294, %s298
          %s300 = smul.addr %s299, 32
          %s301 = scalar_lea.hbm %s1, %s300
          %s303 = sshll.u32 %s289, 4
          %s304 = int_to_ptr.vmem [resolvable:$true] %s303
          %306 = dma.hbm_to_vmem [thread:$0]  %s301, 64, %s304, %s286
        $region36: #{tpu_custom_call.1} parent=27 // pred_fallthru
          _
        // Predicated region
        $region37: #{tpu_custom_call.1} parent=27 // pred_check
          %p307 = pneg %p128
        $region38: #{tpu_custom_call.1} parent=27 // pred_check_branch
          %309 = sbr.rel (%p307) target = $region40
        $region39: #{tpu_custom_call.1} parent=27 // pred_region
          %s310 = sand.u32 %s22, 1
          %s311 = scalar_lea.sflag [#allocation6], %s310
          %s312 = sand.u32 %s118, 1
          %s313 = smul.addr %s312, 4
          %s314 = scalar_lea.vmem [#allocation7], %s313
          %s315 = smul.u32 %s30, 4
          %s316 = sadd.s32 %s315, 4
          %p317 = scmp.lt.s32.totalorder %s316, 7
          %s318 = scalar_select %p317, %s316, 7
          %s319 = smul.u32 2, %s318
          %s321 = ssub.s32 64, 64
          %322 = vsyncadd %s311, %s321
          %s323 = smul.addr %s29, 16
          %s324 = sadd.s32 %s319, %s323
          %s325 = smul.addr %s324, 32
          %s326 = scalar_lea.hbm %s2, %s325
          %s328 = sshll.u32 %s314, 4
          %s329 = int_to_ptr.vmem [resolvable:$true] %s328
          %331 = dma.hbm_to_vmem [thread:$0]  %s326, 64, %s329, %s311
        $region40: #{tpu_custom_call.1} parent=27 // pred_fallthru
          _
      $region28: #{tpu_custom_call.1} parent=5 // pred_fallthru
        _
      %p332 = scmp.le.s32.totalorder 1, %s22
      %p333 = scmp.lt.s32.totalorder %s22, 5
      %p334 = pnand %p332, %p333
      %p335 = pneg %p334
      // Predicated region
      $region41: #{tpu_custom_call.1} parent=5 // pred_check
        _
      $region42: #{tpu_custom_call.1} parent=5 // pred_check_branch
        %337 = sbr.rel (%p334) target = $region44
      $region43: #{tpu_custom_call.1} parent=5 // pred_region
        %s338 = ssub.s32 %s22, 1
        %s339 = sand.u32 %s49, 1
        %s340 = scalar_lea.sflag [#allocation3], %s339
        %s341 = sand.u32 %s49, 1
        %s342 = smul.addr %s341, 16
        %s343 = scalar_lea.vmem [#allocation2], %s342
        // Predicated region
        $region45: #{tpu_custom_call.1} parent=43 // pred_check
          %p344 = pneg %p62
        $region46: #{tpu_custom_call.1} parent=43 // pred_check_branch
          %346 = sbr.rel (%p344) target = $region48
        $region47: #{tpu_custom_call.1} parent=43 // pred_region
          %347 = dma.done %s340, 256
        $region48: #{tpu_custom_call.1} parent=43 // pred_fallthru
          _
        %s348 = sand.u32 %s27, 1
        %s349 = scalar_lea.sflag [#allocation6], %s348
        %s350 = sand.u32 %s85, 1
        %s351 = smul.addr %s350, 4
        %s352 = scalar_lea.vmem [#allocation5], %s351
        // Predicated region
        $region49: #{tpu_custom_call.1} parent=43 // pred_check
          %p353 = pneg %p98
        $region50: #{tpu_custom_call.1} parent=43 // pred_check_branch
          %355 = sbr.rel (%p353) target = $region52
        $region51: #{tpu_custom_call.1} parent=43 // pred_region
          %356 = dma.done %s349, 64
        $region52: #{tpu_custom_call.1} parent=43 // pred_fallthru
          _
        %s357 = sand.u32 %s27, 1
        %s358 = scalar_lea.sflag [#allocation6], %s357
        %s359 = sand.u32 %s121, 1
        %s360 = smul.addr %s359, 4
        %s361 = scalar_lea.vmem [#allocation7], %s360
        // Predicated region
        $region53: #{tpu_custom_call.1} parent=43 // pred_check
          %p362 = pneg %p134
        $region54: #{tpu_custom_call.1} parent=43 // pred_check_branch
          %364 = sbr.rel (%p362) target = $region56
        $region55: #{tpu_custom_call.1} parent=43 // pred_region
          %365 = dma.done %s358, 64
        $region56: #{tpu_custom_call.1} parent=43 // pred_fallthru
          _
        // Predicated region
        $region57: #{tpu_custom_call.1} parent=43 // pred_check
          %p366 = pneg %p197
        $region58: #{tpu_custom_call.1} parent=43 // pred_check_branch
          %368 = sbr.rel (%p366) target = $region60
        $region59: #{tpu_custom_call.1} parent=43 // pred_region
          %369 = dma.done [#allocation9], 512
        $region60: #{tpu_custom_call.1} parent=43 // pred_fallthru
          _
        %s370 = sand.u32 %s49, 1
        %s371 = scalar_lea.sflag [#allocation3], %s370
        %s372 = sand.u32 %s49, 1
        %s373 = smul.addr %s372, 16
        %s374 = scalar_lea.vmem [#allocation2], %s373
        %p375 = pneg %p62
        %p376 = pneg %p59
        %s377 = sand.u32 %s27, 1
        %s378 = scalar_lea.sflag [#allocation6], %s377
        %s379 = sand.u32 %s85, 1
        %s380 = smul.addr %s379, 4
        %s381 = scalar_lea.vmem [#allocation5], %s380
        %p382 = pneg %p98
        %p383 = pneg %p95
        %s384 = sand.u32 %s27, 1
        %s385 = scalar_lea.sflag [#allocation6], %s384
        %s386 = sand.u32 %s121, 1
        %s387 = smul.addr %s386, 4
        %s388 = scalar_lea.vmem [#allocation7], %s387
        %p389 = pneg %p134
        %p390 = pneg %p131
        %p391 = pneg %p155
        %p392 = pneg %p152
        %p393 = pneg %p176
        %p394 = pneg %p173
        %p395 = pneg %p197
        %p396 = pneg %p194
        %p397 = pneg %p225
        %p398 = pneg %p222
        %s399 = sand.u32 %s212, 1
        %s400 = scalar_lea.sflag [#allocation4], %s399
        %s401 = sand.u32 %s212, 1
        %s402 = smul.addr %s401, 32
        %s403 = scalar_lea.vmem [#allocation10], %s402
        %s404 = smul.u32 8, %s32
        %s405 = smul.u32 %s32, 4
        %s406 = ssub.s32 %s405, 1
        %p407 = scmp.gt.s32.totalorder %s406, 0
        %s408 = scalar_select %p407, %s406, 0
        %s409 = smul.u32 2, %s408
        %s410 = smul.u32 %s32, 4
        %s411 = sadd.s32 %s410, 4
        %p412 = scmp.lt.s32.totalorder %s411, 7
        %s413 = scalar_select %p412, %s411, 7
        %s414 = smul.u32 2, %s413
        %s415 = smul.u32 8, %s32
        %s418 = smul.u32 %s32, 4
        %v419 = vld [vmem:[%s343] sm:$0xff]
        %v420 = vld [vmem:[%s343 + $0x8] sm:$0xff]
        %v421 = vld [vmem:[%s352] sm:$0xf]
        %v422 = vld [vmem:[%s361] sm:$0xf]
        %p423 = scmp.eq.s32.totalorder %s418, 0
        %s424 = scalar_select %p423, 1, 0
        %v425 = vstv %s424
        %vm426 = vcmp.eq.s32.totalorder %v425, 1
        %v427 = vsel %vm426, 1, 0
        %v428 = vpack.c.b16 %v427, %v427
        %vm429 = vcmp.ne.s16.totalorder %v428, 0
        %v430 = vsel %vm429, 0, %v421
        %s431 = sadd.s32 %s418, 4
        %p432 = scmp.eq.s32.totalorder %s431, 8
        %s433 = scalar_select %p432, 1, 0
        %v434 = vstv %s433
        %vm435 = vcmp.eq.s32.totalorder %v434, 1
        %v436 = vsel %vm435, 1, 0
        %v437 = vpack.c.b16 %v436, %v436
        %vm438 = vcmp.ne.s16.totalorder %v437, 0
        %v439 = vsel %vm438, 0, %v422
        %v442 = vunpack.c.l.s4 1983009808
        %v443 = vunpack.c.0.s8 %v442
        %v444 = vlaneseq
        %v445 = vshrl.u32 %v444, 7
        %v446 = vsub.s32 %v443, %v445
        %v447 = vrot.slane %v430, %v446
        %v448 = vcombine.high %v447, %v447
        %v451 = vcombine.high %v419, %v419
        %v453 = vunpack.c.l.s4 1983009808
        %v454 = vunpack.c.0.s8 %v453
        %v455 = vlaneseq
        %v456 = vshrl.u32 %v455, 7
        %v457 = vsub.s32 %v454, %v456
        %v458 = vrot.slane %v419, %v457
        %v460 = vunpack.c.l.s4 1983009808
        %v461 = vunpack.c.0.s8 %v460
        %v462 = vlaneseq
        %v463 = vshrl.u32 %v462, 7
        %v464 = vsub.s32 %v461, %v463
        %v465 = vrot.slane %v451, %v464
        %v466 = vcombine.high %v458, %v458
        %v467 = vcombine.high %v465, %v465
        %v469 = vunpack.c.l.s4 1983009808
        %v470 = vunpack.c.0.s8 %v469
        %v471 = vlaneseq
        %v472 = vshrl.u32 %v471, 7
        %v473 = vsub.s32 %v470, %v472
        %v474 = vrot.slane %v420, %v473
        %v475 = vcombine.high %v474, %v474
        %v476 = vcombine.high %v420, %v420
        %v478 = vunpack.c.l.s4 1983009808
        %v479 = vunpack.c.0.s8 %v478
        %v480 = vlaneseq
        %v481 = vshrl.u32 %v480, 7
        %v482 = vsub.s32 %v479, %v481
        %v483 = vrot.slane %v476, %v482
        %v484 = vcombine.high %v483, %v483
        %v487 = vunpack.c.l.s4 1983009808
        %v488 = vunpack.c.0.s8 %v487
        %v489 = vlaneseq
        %v490 = vshrl.u32 %v489, 7
        %v491 = vsub.s32 %v488, %v490
        %v492 = vrot.slane %v439, %v491
        %v493 = vcombine.high %v492, %v492
        %v494 = vld [vmem:[#allocation8] sm:$0x11]
        %v495 = vld [vmem:[#allocation8 + $0x8] sm:$0x11]
        %v496 = vld [vmem:[#allocation8 + $0x10] sm:$0x11]
        %v497 = vld [vmem:[#allocation8 + $0x18] sm:$0x11]
        %v498 = vld [vmem:[#allocation8] sm:$0x22]
        %v499 = vld [vmem:[#allocation8 + $0x8] sm:$0x22]
        %v500 = vld [vmem:[#allocation8 + $0x10] sm:$0x22]
        %v501 = vld [vmem:[#allocation8 + $0x18] sm:$0x22]
        %v502 = vld [vmem:[#allocation8] sm:$0x44]
        %v503 = vld [vmem:[#allocation8 + $0x8] sm:$0x44]
        %v504 = vld [vmem:[#allocation8 + $0x10] sm:$0x44]
        %v505 = vld [vmem:[#allocation8 + $0x18] sm:$0x44]
        %v506 = vld [vmem:[#allocation8] sm:$0x88]
        %v507 = vld [vmem:[#allocation8 + $0x8] sm:$0x88]
        %v508 = vld [vmem:[#allocation8 + $0x10] sm:$0x88]
        %v509 = vld [vmem:[#allocation8 + $0x18] sm:$0x88]
        %510 = vrot.lane.b32.xlu0 %v475, 17
        %v511 = vpop.permute.xlu0 %510
        %512 = vrot.lane.b32.xlu0 %v447, 17
        %v513 = vpop.permute.xlu0 %512
        %514 = vrot.lane.b32.xlu0 %v448, 17
        %v515 = vpop.permute.xlu0 %514
        %516 = vrot.lane.b32.xlu0 %v458, 17
        %v517 = vpop.permute.xlu0 %516
        %518 = vrot.lane.b32.xlu0 %v466, 17
        %v519 = vpop.permute.xlu0 %518
        %520 = vrot.lane.b32.xlu0 %v465, 17
        %v521 = vpop.permute.xlu0 %520
        %522 = vrot.lane.b32.xlu0 %v467, 17
        %v523 = vpop.permute.xlu0 %522
        %524 = vrot.lane.b32.xlu0 %v474, 17
        %v525 = vpop.permute.xlu0 %524
        %vm526 = vcmask 138240
        %v527 = vsel %vm526, %v513, %v515
        %v528 = vsel %vm526, %v515, %v517
        %v529 = vsel %vm526, %v517, %v519
        %v530 = vsel %vm526, %v519, %v521
        %v531 = vsel %vm526, %v521, %v523
        %v532 = vsel %vm526, %v523, %v525
        %v533 = vsel %vm526, %v525, %v511
        %vm541 = vcmask 138240
        %v544 = vsel %vm541, %v511, %v513
        %v550 = vunpack.c.l.b16 %v494
        %v551 = vunpack.c.h.b16 %v494
        %v552 = vunpack.c.l.b16 %v495
        %v553 = vunpack.c.h.b16 %v495
        %v554 = vunpack.c.l.b16 %v496
        %v555 = vunpack.c.h.b16 %v496
        %v556 = vunpack.c.l.b16 %v497
        %v557 = vunpack.c.h.b16 %v497
        %v558 = vpack.c.b16 %v550, %v550
        %v559 = vpack.c.b16 %v551, %v551
        %v560 = vpack.c.b16 %v552, %v552
        %v561 = vpack.c.b16 %v553, %v553
        %v562 = vpack.c.b16 %v554, %v554
        %v563 = vpack.c.b16 %v555, %v555
        %v564 = vpack.c.b16 %v556, %v556
        %v565 = vpack.c.b16 %v557, %v557
        %v567 = vpack.i.b16 %v558, %v558
        %v569 = vlaneseq
        %v570 = vshrl.u32 %v569, 7
        %v571 = vsub.s32 0, %v570
        %v572 = vrot.slane %v567, %v571
        %v574 = vpack.i.b16 %v559, %v559
        %v576 = vlaneseq
        %v577 = vshrl.u32 %v576, 7
        %v578 = vsub.s32 0, %v577
        %v579 = vrot.slane %v574, %v578
        %v581 = vpack.i.b16 %v560, %v560
        %v583 = vlaneseq
        %v584 = vshrl.u32 %v583, 7
        %v585 = vsub.s32 0, %v584
        %v586 = vrot.slane %v581, %v585
        %v588 = vpack.i.b16 %v561, %v561
        %v590 = vlaneseq
        %v591 = vshrl.u32 %v590, 7
        %v592 = vsub.s32 0, %v591
        %v593 = vrot.slane %v588, %v592
        %v595 = vpack.i.b16 %v562, %v562
        %v597 = vlaneseq
        %v598 = vshrl.u32 %v597, 7
        %v599 = vsub.s32 0, %v598
        %v600 = vrot.slane %v595, %v599
        %v602 = vpack.i.b16 %v563, %v563
        %v604 = vlaneseq
        %v605 = vshrl.u32 %v604, 7
        %v606 = vsub.s32 0, %v605
        %v607 = vrot.slane %v602, %v606
        %v609 = vpack.i.b16 %v564, %v564
        %v611 = vlaneseq
        %v612 = vshrl.u32 %v611, 7
        %v613 = vsub.s32 0, %v612
        %v614 = vrot.slane %v609, %v613
        %v616 = vpack.i.b16 %v565, %v565
        %v618 = vlaneseq
        %v619 = vshrl.u32 %v618, 7
        %v620 = vsub.s32 0, %v619
        %v621 = vrot.slane %v616, %v620
        %v622 = vmul.bf16 %v544, %v572
        %v623 = vmul.bf16 %v527, %v579
        %v624 = vmul.bf16 %v528, %v586
        %v625 = vmul.bf16 %v529, %v593
        %v626 = vmul.bf16 %v530, %v600
        %v627 = vmul.bf16 %v531, %v607
        %v628 = vmul.bf16 %v532, %v614
        %v629 = vmul.bf16 %v533, %v621
        %630 = vrot.lane.b32.xlu0 %v475, 16
        %v631 = vpop.permute.xlu0 %630
        %632 = vrot.lane.b32.xlu0 %v447, 16
        %v633 = vpop.permute.xlu0 %632
        %634 = vrot.lane.b32.xlu0 %v448, 16
        %v635 = vpop.permute.xlu0 %634
        %636 = vrot.lane.b32.xlu0 %v458, 16
        %v637 = vpop.permute.xlu0 %636
        %638 = vrot.lane.b32.xlu0 %v466, 16
        %v639 = vpop.permute.xlu0 %638
        %640 = vrot.lane.b32.xlu0 %v465, 16
        %v641 = vpop.permute.xlu0 %640
        %642 = vrot.lane.b32.xlu0 %v467, 16
        %v643 = vpop.permute.xlu0 %642
        %644 = vrot.lane.b32.xlu0 %v474, 16
        %v645 = vpop.permute.xlu0 %644
        %vm646 = vcmask 130048
        %v647 = vsel %vm646, %v633, %v635
        %v648 = vsel %vm646, %v635, %v637
        %v649 = vsel %vm646, %v637, %v639
        %v650 = vsel %vm646, %v639, %v641
        %v651 = vsel %vm646, %v641, %v643
        %v652 = vsel %vm646, %v643, %v645
        %v653 = vsel %vm646, %v645, %v631
        %vm661 = vcmask 130048
        %v664 = vsel %vm661, %v631, %v633
        %v666 = vshrl.u32 %v558, 16
        %v667 = vpack.i.b16 %v666, %v666
        %v669 = vlaneseq
        %v670 = vshrl.u32 %v669, 7
        %v671 = vsub.s32 0, %v670
        %v672 = vrot.slane %v667, %v671
        %v673 = vshrl.u32 %v559, 16
        %v674 = vpack.i.b16 %v673, %v673
        %v676 = vlaneseq
        %v677 = vshrl.u32 %v676, 7
        %v678 = vsub.s32 0, %v677
        %v679 = vrot.slane %v674, %v678
        %v680 = vshrl.u32 %v560, 16
        %v681 = vpack.i.b16 %v680, %v680
        %v683 = vlaneseq
        %v684 = vshrl.u32 %v683, 7
        %v685 = vsub.s32 0, %v684
        %v686 = vrot.slane %v681, %v685
        %v687 = vshrl.u32 %v561, 16
        %v688 = vpack.i.b16 %v687, %v687
        %v690 = vlaneseq
        %v691 = vshrl.u32 %v690, 7
        %v692 = vsub.s32 0, %v691
        %v693 = vrot.slane %v688, %v692
        %v694 = vshrl.u32 %v562, 16
        %v695 = vpack.i.b16 %v694, %v694
        %v697 = vlaneseq
        %v698 = vshrl.u32 %v697, 7
        %v699 = vsub.s32 0, %v698
        %v700 = vrot.slane %v695, %v699
        %v701 = vshrl.u32 %v563, 16
        %v702 = vpack.i.b16 %v701, %v701
        %v704 = vlaneseq
        %v705 = vshrl.u32 %v704, 7
        %v706 = vsub.s32 0, %v705
        %v707 = vrot.slane %v702, %v706
        %v708 = vshrl.u32 %v564, 16
        %v709 = vpack.i.b16 %v708, %v708
        %v711 = vlaneseq
        %v712 = vshrl.u32 %v711, 7
        %v713 = vsub.s32 0, %v712
        %v714 = vrot.slane %v709, %v713
        %v715 = vshrl.u32 %v565, 16
        %v716 = vpack.i.b16 %v715, %v715
        %v718 = vlaneseq
        %v719 = vshrl.u32 %v718, 7
        %v720 = vsub.s32 0, %v719
        %v721 = vrot.slane %v716, %v720
        %v722 = vmul.bf16 %v664, %v672
        %v723 = vmul.bf16 %v647, %v679
        %v724 = vmul.bf16 %v648, %v686
        %v725 = vmul.bf16 %v649, %v693
        %v726 = vmul.bf16 %v650, %v700
        %v727 = vmul.bf16 %v651, %v707
        %v728 = vmul.bf16 %v652, %v714
        %v729 = vmul.bf16 %v653, %v721
        %730 = vrot.lane.b32.xlu0 %v475, 15
        %v731 = vpop.permute.xlu0 %730
        %732 = vrot.lane.b32.xlu0 %v447, 15
        %v733 = vpop.permute.xlu0 %732
        %734 = vrot.lane.b32.xlu0 %v448, 15
        %v735 = vpop.permute.xlu0 %734
        %736 = vrot.lane.b32.xlu0 %v458, 15
        %v737 = vpop.permute.xlu0 %736
        %738 = vrot.lane.b32.xlu0 %v466, 15
        %v739 = vpop.permute.xlu0 %738
        %740 = vrot.lane.b32.xlu0 %v465, 15
        %v741 = vpop.permute.xlu0 %740
        %742 = vrot.lane.b32.xlu0 %v467, 15
        %v743 = vpop.permute.xlu0 %742
        %744 = vrot.lane.b32.xlu0 %v474, 15
        %v745 = vpop.permute.xlu0 %744
        %vm746 = vcmask 121856
        %v747 = vsel %vm746, %v733, %v735
        %v748 = vsel %vm746, %v735, %v737
        %v749 = vsel %vm746, %v737, %v739
        %v750 = vsel %vm746, %v739, %v741
        %v751 = vsel %vm746, %v741, %v743
        %v752 = vsel %vm746, %v743, %v745
        %v753 = vsel %vm746, %v745, %v731
        %vm761 = vcmask 121856
        %v764 = vsel %vm761, %v731, %v733
        %v770 = vunpack.c.l.b16 %v498
        %v771 = vunpack.c.h.b16 %v498
        %v772 = vunpack.c.l.b16 %v499
        %v773 = vunpack.c.h.b16 %v499
        %v774 = vunpack.c.l.b16 %v500
        %v775 = vunpack.c.h.b16 %v500
        %v776 = vunpack.c.l.b16 %v501
        %v777 = vunpack.c.h.b16 %v501
        %v778 = vpack.c.b16 %v770, %v770
        %v779 = vpack.c.b16 %v771, %v771
        %v780 = vpack.c.b16 %v772, %v772
        %v781 = vpack.c.b16 %v773, %v773
        %v782 = vpack.c.b16 %v774, %v774
        %v783 = vpack.c.b16 %v775, %v775
        %v784 = vpack.c.b16 %v776, %v776
        %v785 = vpack.c.b16 %v777, %v777
        %v787 = vpack.i.b16 %v778, %v778
        %v789 = vlaneseq
        %v790 = vshrl.u32 %v789, 7
        %v791 = vsub.s32 1, %v790
        %v792 = vrot.slane %v787, %v791
        %v794 = vpack.i.b16 %v779, %v779
        %v796 = vlaneseq
        %v797 = vshrl.u32 %v796, 7
        %v798 = vsub.s32 1, %v797
        %v799 = vrot.slane %v794, %v798
        %v801 = vpack.i.b16 %v780, %v780
        %v803 = vlaneseq
        %v804 = vshrl.u32 %v803, 7
        %v805 = vsub.s32 1, %v804
        %v806 = vrot.slane %v801, %v805
        %v808 = vpack.i.b16 %v781, %v781
        %v810 = vlaneseq
        %v811 = vshrl.u32 %v810, 7
        %v812 = vsub.s32 1, %v811
        %v813 = vrot.slane %v808, %v812
        %v815 = vpack.i.b16 %v782, %v782
        %v817 = vlaneseq
        %v818 = vshrl.u32 %v817, 7
        %v819 = vsub.s32 1, %v818
        %v820 = vrot.slane %v815, %v819
        %v822 = vpack.i.b16 %v783, %v783
        %v824 = vlaneseq
        %v825 = vshrl.u32 %v824, 7
        %v826 = vsub.s32 1, %v825
        %v827 = vrot.slane %v822, %v826
        %v829 = vpack.i.b16 %v784, %v784
        %v831 = vlaneseq
        %v832 = vshrl.u32 %v831, 7
        %v833 = vsub.s32 1, %v832
        %v834 = vrot.slane %v829, %v833
        %v836 = vpack.i.b16 %v785, %v785
        %v838 = vlaneseq
        %v839 = vshrl.u32 %v838, 7
        %v840 = vsub.s32 1, %v839
        %v841 = vrot.slane %v836, %v840
        %v842 = vmul.bf16 %v764, %v792
        %v843 = vmul.bf16 %v747, %v799
        %v844 = vmul.bf16 %v748, %v806
        %v845 = vmul.bf16 %v749, %v813
        %v846 = vmul.bf16 %v750, %v820
        %v847 = vmul.bf16 %v751, %v827
        %v848 = vmul.bf16 %v752, %v834
        %v849 = vmul.bf16 %v753, %v841
        %850 = vrot.lane.b32.xlu0 %v475, 1
        %v851 = vpop.permute.xlu0 %850
        %852 = vrot.lane.b32.xlu0 %v447, 1
        %v853 = vpop.permute.xlu0 %852
        %854 = vrot.lane.b32.xlu0 %v448, 1
        %v855 = vpop.permute.xlu0 %854
        %856 = vrot.lane.b32.xlu0 %v458, 1
        %v857 = vpop.permute.xlu0 %856
        %858 = vrot.lane.b32.xlu0 %v466, 1
        %v859 = vpop.permute.xlu0 %858
        %860 = vrot.lane.b32.xlu0 %v465, 1
        %v861 = vpop.permute.xlu0 %860
        %862 = vrot.lane.b32.xlu0 %v467, 1
        %v863 = vpop.permute.xlu0 %862
        %864 = vrot.lane.b32.xlu0 %v474, 1
        %v865 = vpop.permute.xlu0 %864
        %vm866 = vcmask 7168
        %v867 = vsel %vm866, %v853, %v855
        %v868 = vsel %vm866, %v855, %v857
        %v869 = vsel %vm866, %v857, %v859
        %v870 = vsel %vm866, %v859, %v861
        %v871 = vsel %vm866, %v861, %v863
        %v872 = vsel %vm866, %v863, %v865
        %v873 = vsel %vm866, %v865, %v851
        %vm881 = vcmask 7168
        %v884 = vsel %vm881, %v851, %v853
        %v886 = vshrl.u32 %v778, 16
        %v887 = vpack.i.b16 %v886, %v886
        %v889 = vlaneseq
        %v890 = vshrl.u32 %v889, 7
        %v891 = vsub.s32 1, %v890
        %v892 = vrot.slane %v887, %v891
        %v893 = vshrl.u32 %v779, 16
        %v894 = vpack.i.b16 %v893, %v893
        %v896 = vlaneseq
        %v897 = vshrl.u32 %v896, 7
        %v898 = vsub.s32 1, %v897
        %v899 = vrot.slane %v894, %v898
        %v900 = vshrl.u32 %v780, 16
        %v901 = vpack.i.b16 %v900, %v900
        %v903 = vlaneseq
        %v904 = vshrl.u32 %v903, 7
        %v905 = vsub.s32 1, %v904
        %v906 = vrot.slane %v901, %v905
        %v907 = vshrl.u32 %v781, 16
        %v908 = vpack.i.b16 %v907, %v907
        %v910 = vlaneseq
        %v911 = vshrl.u32 %v910, 7
        %v912 = vsub.s32 1, %v911
        %v913 = vrot.slane %v908, %v912
        %v914 = vshrl.u32 %v782, 16
        %v915 = vpack.i.b16 %v914, %v914
        %v917 = vlaneseq
        %v918 = vshrl.u32 %v917, 7
        %v919 = vsub.s32 1, %v918
        %v920 = vrot.slane %v915, %v919
        %v921 = vshrl.u32 %v783, 16
        %v922 = vpack.i.b16 %v921, %v921
        %v924 = vlaneseq
        %v925 = vshrl.u32 %v924, 7
        %v926 = vsub.s32 1, %v925
        %v927 = vrot.slane %v922, %v926
        %v928 = vshrl.u32 %v784, 16
        %v929 = vpack.i.b16 %v928, %v928
        %v931 = vlaneseq
        %v932 = vshrl.u32 %v931, 7
        %v933 = vsub.s32 1, %v932
        %v934 = vrot.slane %v929, %v933
        %v935 = vshrl.u32 %v785, 16
        %v936 = vpack.i.b16 %v935, %v935
        %v938 = vlaneseq
        %v939 = vshrl.u32 %v938, 7
        %v940 = vsub.s32 1, %v939
        %v941 = vrot.slane %v936, %v940
        %v942 = vmul.bf16 %v884, %v892
        %v943 = vmul.bf16 %v867, %v899
        %v944 = vmul.bf16 %v868, %v906
        %v945 = vmul.bf16 %v869, %v913
        %v946 = vmul.bf16 %v870, %v920
        %v947 = vmul.bf16 %v871, %v927
        %v948 = vmul.bf16 %v872, %v934
        %v949 = vmul.bf16 %v873, %v941
        %950 = vrot.lane.b32.xlu0 %v447, 127
        %v951 = vpop.permute.xlu0 %950
        %952 = vrot.lane.b32.xlu0 %v448, 127
        %v953 = vpop.permute.xlu0 %952
        %954 = vrot.lane.b32.xlu0 %v458, 127
        %v955 = vpop.permute.xlu0 %954
        %956 = vrot.lane.b32.xlu0 %v466, 127
        %v957 = vpop.permute.xlu0 %956
        %958 = vrot.lane.b32.xlu0 %v465, 127
        %v959 = vpop.permute.xlu0 %958
        %960 = vrot.lane.b32.xlu0 %v467, 127
        %v961 = vpop.permute.xlu0 %960
        %962 = vrot.lane.b32.xlu0 %v474, 127
        %v963 = vpop.permute.xlu0 %962
        %964 = vrot.lane.b32.xlu0 %v475, 127
        %v965 = vpop.permute.xlu0 %964
        %vm966 = vcmask 1039360
        %v967 = vsel %vm966, %v951, %v953
        %v968 = vsel %vm966, %v953, %v955
        %v969 = vsel %vm966, %v955, %v957
        %v970 = vsel %vm966, %v957, %v959
        %v971 = vsel %vm966, %v959, %v961
        %v972 = vsel %vm966, %v961, %v963
        %v973 = vsel %vm966, %v963, %v965
        %vm981 = vcmask 1039360
        %v984 = vsel %vm981, %v965, %v951
        %v990 = vunpack.c.l.b16 %v502
        %v991 = vunpack.c.h.b16 %v502
        %v992 = vunpack.c.l.b16 %v503
        %v993 = vunpack.c.h.b16 %v503
        %v994 = vunpack.c.l.b16 %v504
        %v995 = vunpack.c.h.b16 %v504
        %v996 = vunpack.c.l.b16 %v505
        %v997 = vunpack.c.h.b16 %v505
        %v998 = vpack.c.b16 %v990, %v990
        %v999 = vpack.c.b16 %v991, %v991
        %v1000 = vpack.c.b16 %v992, %v992
        %v1001 = vpack.c.b16 %v993, %v993
        %v1002 = vpack.c.b16 %v994, %v994
        %v1003 = vpack.c.b16 %v995, %v995
        %v1004 = vpack.c.b16 %v996, %v996
        %v1005 = vpack.c.b16 %v997, %v997
        %v1007 = vpack.i.b16 %v998, %v998
        %v1009 = vlaneseq
        %v1010 = vshrl.u32 %v1009, 7
        %v1011 = vsub.s32 2, %v1010
        %v1012 = vrot.slane %v1007, %v1011
        %v1014 = vpack.i.b16 %v999, %v999
        %v1016 = vlaneseq
        %v1017 = vshrl.u32 %v1016, 7
        %v1018 = vsub.s32 2, %v1017
        %v1019 = vrot.slane %v1014, %v1018
        %v1021 = vpack.i.b16 %v1000, %v1000
        %v1023 = vlaneseq
        %v1024 = vshrl.u32 %v1023, 7
        %v1025 = vsub.s32 2, %v1024
        %v1026 = vrot.slane %v1021, %v1025
        %v1028 = vpack.i.b16 %v1001, %v1001
        %v1030 = vlaneseq
        %v1031 = vshrl.u32 %v1030, 7
        %v1032 = vsub.s32 2, %v1031
        %v1033 = vrot.slane %v1028, %v1032
        %v1035 = vpack.i.b16 %v1002, %v1002
        %v1037 = vlaneseq
        %v1038 = vshrl.u32 %v1037, 7
        %v1039 = vsub.s32 2, %v1038
        %v1040 = vrot.slane %v1035, %v1039
        %v1042 = vpack.i.b16 %v1003, %v1003
        %v1044 = vlaneseq
        %v1045 = vshrl.u32 %v1044, 7
        %v1046 = vsub.s32 2, %v1045
        %v1047 = vrot.slane %v1042, %v1046
        %v1049 = vpack.i.b16 %v1004, %v1004
        %v1051 = vlaneseq
        %v1052 = vshrl.u32 %v1051, 7
        %v1053 = vsub.s32 2, %v1052
        %v1054 = vrot.slane %v1049, %v1053
        %v1056 = vpack.i.b16 %v1005, %v1005
        %v1058 = vlaneseq
        %v1059 = vshrl.u32 %v1058, 7
        %v1060 = vsub.s32 2, %v1059
        %v1061 = vrot.slane %v1056, %v1060
        %v1062 = vmul.bf16 %v967, %v1012
        %v1063 = vmul.bf16 %v968, %v1019
        %v1064 = vmul.bf16 %v969, %v1026
        %v1065 = vmul.bf16 %v970, %v1033
        %v1066 = vmul.bf16 %v971, %v1040
        %v1067 = vmul.bf16 %v972, %v1047
        %v1068 = vmul.bf16 %v973, %v1054
        %v1069 = vmul.bf16 %v984, %v1061
        %1070 = vrot.lane.b32.xlu0 %v447, 113
        %v1071 = vpop.permute.xlu0 %1070
        %1072 = vrot.lane.b32.xlu0 %v448, 113
        %v1073 = vpop.permute.xlu0 %1072
        %1074 = vrot.lane.b32.xlu0 %v458, 113
        %v1075 = vpop.permute.xlu0 %1074
        %1076 = vrot.lane.b32.xlu0 %v466, 113
        %v1077 = vpop.permute.xlu0 %1076
        %1078 = vrot.lane.b32.xlu0 %v465, 113
        %v1079 = vpop.permute.xlu0 %1078
        %1080 = vrot.lane.b32.xlu0 %v467, 113
        %v1081 = vpop.permute.xlu0 %1080
        %1082 = vrot.lane.b32.xlu0 %v474, 113
        %v1083 = vpop.permute.xlu0 %1082
        %1084 = vrot.lane.b32.xlu0 %v475, 113
        %v1085 = vpop.permute.xlu0 %1084
        %vm1086 = vcmask 924672
        %v1087 = vsel %vm1086, %v1071, %v1073
        %v1088 = vsel %vm1086, %v1073, %v1075
        %v1089 = vsel %vm1086, %v1075, %v1077
        %v1090 = vsel %vm1086, %v1077, %v1079
        %v1091 = vsel %vm1086, %v1079, %v1081
        %v1092 = vsel %vm1086, %v1081, %v1083
        %v1093 = vsel %vm1086, %v1083, %v1085
        %vm1101 = vcmask 924672
        %v1104 = vsel %vm1101, %v1085, %v1071
        %v1106 = vshrl.u32 %v998, 16
        %v1107 = vpack.i.b16 %v1106, %v1106
        %v1109 = vlaneseq
        %v1110 = vshrl.u32 %v1109, 7
        %v1111 = vsub.s32 2, %v1110
        %v1112 = vrot.slane %v1107, %v1111
        %v1113 = vshrl.u32 %v999, 16
        %v1114 = vpack.i.b16 %v1113, %v1113
        %v1116 = vlaneseq
        %v1117 = vshrl.u32 %v1116, 7
        %v1118 = vsub.s32 2, %v1117
        %v1119 = vrot.slane %v1114, %v1118
        %v1120 = vshrl.u32 %v1000, 16
        %v1121 = vpack.i.b16 %v1120, %v1120
        %v1123 = vlaneseq
        %v1124 = vshrl.u32 %v1123, 7
        %v1125 = vsub.s32 2, %v1124
        %v1126 = vrot.slane %v1121, %v1125
        %v1127 = vshrl.u32 %v1001, 16
        %v1128 = vpack.i.b16 %v1127, %v1127
        %v1130 = vlaneseq
        %v1131 = vshrl.u32 %v1130, 7
        %v1132 = vsub.s32 2, %v1131
        %v1133 = vrot.slane %v1128, %v1132
        %v1134 = vshrl.u32 %v1002, 16
        %v1135 = vpack.i.b16 %v1134, %v1134
        %v1137 = vlaneseq
        %v1138 = vshrl.u32 %v1137, 7
        %v1139 = vsub.s32 2, %v1138
        %v1140 = vrot.slane %v1135, %v1139
        %v1141 = vshrl.u32 %v1003, 16
        %v1142 = vpack.i.b16 %v1141, %v1141
        %v1144 = vlaneseq
        %v1145 = vshrl.u32 %v1144, 7
        %v1146 = vsub.s32 2, %v1145
        %v1147 = vrot.slane %v1142, %v1146
        %v1148 = vshrl.u32 %v1004, 16
        %v1149 = vpack.i.b16 %v1148, %v1148
        %v1151 = vlaneseq
        %v1152 = vshrl.u32 %v1151, 7
        %v1153 = vsub.s32 2, %v1152
        %v1154 = vrot.slane %v1149, %v1153
        %v1155 = vshrl.u32 %v1005, 16
        %v1156 = vpack.i.b16 %v1155, %v1155
        %v1158 = vlaneseq
        %v1159 = vshrl.u32 %v1158, 7
        %v1160 = vsub.s32 2, %v1159
        %v1161 = vrot.slane %v1156, %v1160
        %v1162 = vmul.bf16 %v1087, %v1112
        %v1163 = vmul.bf16 %v1088, %v1119
        %v1164 = vmul.bf16 %v1089, %v1126
        %v1165 = vmul.bf16 %v1090, %v1133
        %v1166 = vmul.bf16 %v1091, %v1140
        %v1167 = vmul.bf16 %v1092, %v1147
        %v1168 = vmul.bf16 %v1093, %v1154
        %v1169 = vmul.bf16 %v1104, %v1161
        %1170 = vrot.lane.b32.xlu0 %v447, 112
        %v1171 = vpop.permute.xlu0 %1170
        %1172 = vrot.lane.b32.xlu0 %v448, 112
        %v1173 = vpop.permute.xlu0 %1172
        %1174 = vrot.lane.b32.xlu0 %v458, 112
        %v1175 = vpop.permute.xlu0 %1174
        %1176 = vrot.lane.b32.xlu0 %v466, 112
        %v1177 = vpop.permute.xlu0 %1176
        %1178 = vrot.lane.b32.xlu0 %v465, 112
        %v1179 = vpop.permute.xlu0 %1178
        %1180 = vrot.lane.b32.xlu0 %v467, 112
        %v1181 = vpop.permute.xlu0 %1180
        %1182 = vrot.lane.b32.xlu0 %v474, 112
        %v1183 = vpop.permute.xlu0 %1182
        %1184 = vrot.lane.b32.xlu0 %v475, 112
        %v1185 = vpop.permute.xlu0 %1184
        %vm1186 = vcmask 916480
        %v1187 = vsel %vm1186, %v1171, %v1173
        %v1188 = vsel %vm1186, %v1173, %v1175
        %v1189 = vsel %vm1186, %v1175, %v1177
        %v1190 = vsel %vm1186, %v1177, %v1179
        %v1191 = vsel %vm1186, %v1179, %v1181
        %v1192 = vsel %vm1186, %v1181, %v1183
        %v1193 = vsel %vm1186, %v1183, %v1185
        %vm1201 = vcmask 916480
        %v1204 = vsel %vm1201, %v1185, %v1171
        %v1210 = vunpack.c.l.b16 %v506
        %v1211 = vunpack.c.h.b16 %v506
        %v1212 = vunpack.c.l.b16 %v507
        %v1213 = vunpack.c.h.b16 %v507
        %v1214 = vunpack.c.l.b16 %v508
        %v1215 = vunpack.c.h.b16 %v508
        %v1216 = vunpack.c.l.b16 %v509
        %v1217 = vunpack.c.h.b16 %v509
        %v1218 = vpack.c.b16 %v1210, %v1210
        %v1219 = vpack.c.b16 %v1211, %v1211
        %v1220 = vpack.c.b16 %v1212, %v1212
        %v1221 = vpack.c.b16 %v1213, %v1213
        %v1222 = vpack.c.b16 %v1214, %v1214
        %v1223 = vpack.c.b16 %v1215, %v1215
        %v1224 = vpack.c.b16 %v1216, %v1216
        %v1225 = vpack.c.b16 %v1217, %v1217
        %v1227 = vpack.i.b16 %v1218, %v1218
        %v1229 = vlaneseq
        %v1230 = vshrl.u32 %v1229, 7
        %v1231 = vsub.s32 3, %v1230
        %v1232 = vrot.slane %v1227, %v1231
        %v1234 = vpack.i.b16 %v1219, %v1219
        %v1236 = vlaneseq
        %v1237 = vshrl.u32 %v1236, 7
        %v1238 = vsub.s32 3, %v1237
        %v1239 = vrot.slane %v1234, %v1238
        %v1241 = vpack.i.b16 %v1220, %v1220
        %v1243 = vlaneseq
        %v1244 = vshrl.u32 %v1243, 7
        %v1245 = vsub.s32 3, %v1244
        %v1246 = vrot.slane %v1241, %v1245
        %v1248 = vpack.i.b16 %v1221, %v1221
        %v1250 = vlaneseq
        %v1251 = vshrl.u32 %v1250, 7
        %v1252 = vsub.s32 3, %v1251
        %v1253 = vrot.slane %v1248, %v1252
        %v1255 = vpack.i.b16 %v1222, %v1222
        %v1257 = vlaneseq
        %v1258 = vshrl.u32 %v1257, 7
        %v1259 = vsub.s32 3, %v1258
        %v1260 = vrot.slane %v1255, %v1259
        %v1262 = vpack.i.b16 %v1223, %v1223
        %v1264 = vlaneseq
        %v1265 = vshrl.u32 %v1264, 7
        %v1266 = vsub.s32 3, %v1265
        %v1267 = vrot.slane %v1262, %v1266
        %v1269 = vpack.i.b16 %v1224, %v1224
        %v1271 = vlaneseq
        %v1272 = vshrl.u32 %v1271, 7
        %v1273 = vsub.s32 3, %v1272
        %v1274 = vrot.slane %v1269, %v1273
        %v1276 = vpack.i.b16 %v1225, %v1225
        %v1278 = vlaneseq
        %v1279 = vshrl.u32 %v1278, 7
        %v1280 = vsub.s32 3, %v1279
        %v1281 = vrot.slane %v1276, %v1280
        %v1282 = vmul.bf16 %v1187, %v1232
        %v1283 = vmul.bf16 %v1188, %v1239
        %v1284 = vmul.bf16 %v1189, %v1246
        %v1285 = vmul.bf16 %v1190, %v1253
        %v1286 = vmul.bf16 %v1191, %v1260
        %v1287 = vmul.bf16 %v1192, %v1267
        %v1288 = vmul.bf16 %v1193, %v1274
        %v1289 = vmul.bf16 %v1204, %v1281
        %1290 = vrot.lane.b32.xlu0 %v447, 111
        %v1291 = vpop.permute.xlu0 %1290
        %1292 = vrot.lane.b32.xlu0 %v448, 111
        %v1293 = vpop.permute.xlu0 %1292
        %1294 = vrot.lane.b32.xlu0 %v458, 111
        %v1295 = vpop.permute.xlu0 %1294
        %1296 = vrot.lane.b32.xlu0 %v466, 111
        %v1297 = vpop.permute.xlu0 %1296
        %1298 = vrot.lane.b32.xlu0 %v465, 111
        %v1299 = vpop.permute.xlu0 %1298
        %1300 = vrot.lane.b32.xlu0 %v467, 111
        %v1301 = vpop.permute.xlu0 %1300
        %1302 = vrot.lane.b32.xlu0 %v474, 111
        %v1303 = vpop.permute.xlu0 %1302
        %1304 = vrot.lane.b32.xlu0 %v475, 111
        %v1305 = vpop.permute.xlu0 %1304
        %vm1306 = vcmask 908288
        %v1307 = vsel %vm1306, %v1291, %v1293
        %v1308 = vsel %vm1306, %v1293, %v1295
        %v1309 = vsel %vm1306, %v1295, %v1297
        %v1310 = vsel %vm1306, %v1297, %v1299
        %v1311 = vsel %vm1306, %v1299, %v1301
        %v1312 = vsel %vm1306, %v1301, %v1303
        %v1313 = vsel %vm1306, %v1303, %v1305
        %vm1321 = vcmask 908288
        %v1324 = vsel %vm1321, %v1305, %v1291
        %v1326 = vshrl.u32 %v1218, 16
        %v1327 = vpack.i.b16 %v1326, %v1326
        %v1329 = vlaneseq
        %v1330 = vshrl.u32 %v1329, 7
        %v1331 = vsub.s32 3, %v1330
        %v1332 = vrot.slane %v1327, %v1331
        %v1333 = vshrl.u32 %v1219, 16
        %v1334 = vpack.i.b16 %v1333, %v1333
        %v1336 = vlaneseq
        %v1337 = vshrl.u32 %v1336, 7
        %v1338 = vsub.s32 3, %v1337
        %v1339 = vrot.slane %v1334, %v1338
        %v1340 = vshrl.u32 %v1220, 16
        %v1341 = vpack.i.b16 %v1340, %v1340
        %v1343 = vlaneseq
        %v1344 = vshrl.u32 %v1343, 7
        %v1345 = vsub.s32 3, %v1344
        %v1346 = vrot.slane %v1341, %v1345
        %v1347 = vshrl.u32 %v1221, 16
        %v1348 = vpack.i.b16 %v1347, %v1347
        %v1350 = vlaneseq
        %v1351 = vshrl.u32 %v1350, 7
        %v1352 = vsub.s32 3, %v1351
        %v1353 = vrot.slane %v1348, %v1352
        %v1354 = vshrl.u32 %v1222, 16
        %v1355 = vpack.i.b16 %v1354, %v1354
        %v1357 = vlaneseq
        %v1358 = vshrl.u32 %v1357, 7
        %v1359 = vsub.s32 3, %v1358
        %v1360 = vrot.slane %v1355, %v1359
        %v1361 = vshrl.u32 %v1223, 16
        %v1362 = vpack.i.b16 %v1361, %v1361
        %v1364 = vlaneseq
        %v1365 = vshrl.u32 %v1364, 7
        %v1366 = vsub.s32 3, %v1365
        %v1367 = vrot.slane %v1362, %v1366
        %v1368 = vshrl.u32 %v1224, 16
        %v1369 = vpack.i.b16 %v1368, %v1368
        %v1371 = vlaneseq
        %v1372 = vshrl.u32 %v1371, 7
        %v1373 = vsub.s32 3, %v1372
        %v1374 = vrot.slane %v1369, %v1373
        %v1375 = vshrl.u32 %v1225, 16
        %v1376 = vpack.i.b16 %v1375, %v1375
        %v1378 = vlaneseq
        %v1379 = vshrl.u32 %v1378, 7
        %v1380 = vsub.s32 3, %v1379
        %v1381 = vrot.slane %v1376, %v1380
        %v1382 = vmul.bf16 %v1307, %v1332
        %v1383 = vmul.bf16 %v1308, %v1339
        %v1384 = vmul.bf16 %v1309, %v1346
        %v1385 = vmul.bf16 %v1310, %v1353
        %v1386 = vmul.bf16 %v1311, %v1360
        %v1387 = vmul.bf16 %v1312, %v1367
        %v1388 = vmul.bf16 %v1313, %v1374
        %v1389 = vmul.bf16 %v1324, %v1381
        %1390 = vrot.lane.b32.xlu0 %v484, 17
        %v1391 = vpop.permute.xlu0 %1390
        %1392 = vrot.lane.b32.xlu0 %v483, 17
        %v1393 = vpop.permute.xlu0 %1392
        %v1394 = vsel %vm526, %v511, %v1393
        %v1395 = vsel %vm526, %v1393, %v1391
        %v1400 = vsel %vm541, %v1391, %v517
        %v1402 = vmul.bf16 %v1400, %v572
        %v1403 = vmul.bf16 %v529, %v579
        %v1404 = vmul.bf16 %v530, %v586
        %v1405 = vmul.bf16 %v531, %v593
        %v1406 = vmul.bf16 %v532, %v600
        %v1407 = vmul.bf16 %v533, %v607
        %v1408 = vmul.bf16 %v1394, %v614
        %v1409 = vmul.bf16 %v1395, %v621
        %1410 = vrot.lane.b32.xlu0 %v484, 16
        %v1411 = vpop.permute.xlu0 %1410
        %1412 = vrot.lane.b32.xlu0 %v483, 16
        %v1413 = vpop.permute.xlu0 %1412
        %v1414 = vsel %vm646, %v631, %v1413
        %v1415 = vsel %vm646, %v1413, %v1411
        %v1420 = vsel %vm661, %v1411, %v637
        %v1422 = vmul.bf16 %v1420, %v672
        %v1423 = vmul.bf16 %v649, %v679
        %v1424 = vmul.bf16 %v650, %v686
        %v1425 = vmul.bf16 %v651, %v693
        %v1426 = vmul.bf16 %v652, %v700
        %v1427 = vmul.bf16 %v653, %v707
        %v1428 = vmul.bf16 %v1414, %v714
        %v1429 = vmul.bf16 %v1415, %v721
        %1430 = vrot.lane.b32.xlu0 %v484, 15
        %v1431 = vpop.permute.xlu0 %1430
        %1432 = vrot.lane.b32.xlu0 %v483, 15
        %v1433 = vpop.permute.xlu0 %1432
        %v1434 = vsel %vm746, %v731, %v1433
        %v1435 = vsel %vm746, %v1433, %v1431
        %v1440 = vsel %vm761, %v1431, %v737
        %v1442 = vmul.bf16 %v1440, %v792
        %v1443 = vmul.bf16 %v749, %v799
        %v1444 = vmul.bf16 %v750, %v806
        %v1445 = vmul.bf16 %v751, %v813
        %v1446 = vmul.bf16 %v752, %v820
        %v1447 = vmul.bf16 %v753, %v827
        %v1448 = vmul.bf16 %v1434, %v834
        %v1449 = vmul.bf16 %v1435, %v841
        %1450 = vrot.lane.b32.xlu0 %v484, 1
        %v1451 = vpop.permute.xlu0 %1450
        %1452 = vrot.lane.b32.xlu0 %v483, 1
        %v1453 = vpop.permute.xlu0 %1452
        %v1454 = vsel %vm866, %v851, %v1453
        %v1455 = vsel %vm866, %v1453, %v1451
        %v1460 = vsel %vm881, %v1451, %v857
        %v1462 = vmul.bf16 %v1460, %v892
        %v1463 = vmul.bf16 %v869, %v899
        %v1464 = vmul.bf16 %v870, %v906
        %v1465 = vmul.bf16 %v871, %v913
        %v1466 = vmul.bf16 %v872, %v920
        %v1467 = vmul.bf16 %v873, %v927
        %v1468 = vmul.bf16 %v1454, %v934
        %v1469 = vmul.bf16 %v1455, %v941
        %1470 = vrot.lane.b32.xlu0 %v483, 127
        %v1471 = vpop.permute.xlu0 %1470
        %1472 = vrot.lane.b32.xlu0 %v484, 127
        %v1473 = vpop.permute.xlu0 %1472
        %v1474 = vsel %vm966, %v965, %v1471
        %v1475 = vsel %vm966, %v1471, %v1473
        %v1480 = vsel %vm981, %v1473, %v955
        %v1482 = vmul.bf16 %v969, %v1012
        %v1483 = vmul.bf16 %v970, %v1019
        %v1484 = vmul.bf16 %v971, %v1026
        %v1485 = vmul.bf16 %v972, %v1033
        %v1486 = vmul.bf16 %v973, %v1040
        %v1487 = vmul.bf16 %v1474, %v1047
        %v1488 = vmul.bf16 %v1475, %v1054
        %v1489 = vmul.bf16 %v1480, %v1061
        %1490 = vrot.lane.b32.xlu0 %v483, 113
        %v1491 = vpop.permute.xlu0 %1490
        %1492 = vrot.lane.b32.xlu0 %v484, 113
        %v1493 = vpop.permute.xlu0 %1492
        %v1494 = vsel %vm1086, %v1085, %v1491
        %v1495 = vsel %vm1086, %v1491, %v1493
        %v1500 = vsel %vm1101, %v1493, %v1075
        %v1502 = vmul.bf16 %v1089, %v1112
        %v1503 = vmul.bf16 %v1090, %v1119
        %v1504 = vmul.bf16 %v1091, %v1126
        %v1505 = vmul.bf16 %v1092, %v1133
        %v1506 = vmul.bf16 %v1093, %v1140
        %v1507 = vmul.bf16 %v1494, %v1147
        %v1508 = vmul.bf16 %v1495, %v1154
        %v1509 = vmul.bf16 %v1500, %v1161
        %1510 = vrot.lane.b32.xlu0 %v483, 112
        %v1511 = vpop.permute.xlu0 %1510
        %1512 = vrot.lane.b32.xlu0 %v484, 112
        %v1513 = vpop.permute.xlu0 %1512
        %v1514 = vsel %vm1186, %v1185, %v1511
        %v1515 = vsel %vm1186, %v1511, %v1513
        %v1520 = vsel %vm1201, %v1513, %v1175
        %v1522 = vmul.bf16 %v1189, %v1232
        %v1523 = vmul.bf16 %v1190, %v1239
        %v1524 = vmul.bf16 %v1191, %v1246
        %v1525 = vmul.bf16 %v1192, %v1253
        %v1526 = vmul.bf16 %v1193, %v1260
        %v1527 = vmul.bf16 %v1514, %v1267
        %v1528 = vmul.bf16 %v1515, %v1274
        %v1529 = vmul.bf16 %v1520, %v1281
        %1530 = vrot.lane.b32.xlu0 %v483, 111
        %v1531 = vpop.permute.xlu0 %1530
        %1532 = vrot.lane.b32.xlu0 %v484, 111
        %v1533 = vpop.permute.xlu0 %1532
        %v1534 = vsel %vm1306, %v1305, %v1531
        %v1535 = vsel %vm1306, %v1531, %v1533
        %v1540 = vsel %vm1321, %v1533, %v1295
        %v1542 = vmul.bf16 %v1309, %v1332
        %v1543 = vmul.bf16 %v1310, %v1339
        %v1544 = vmul.bf16 %v1311, %v1346
        %v1545 = vmul.bf16 %v1312, %v1353
        %v1546 = vmul.bf16 %v1313, %v1360
        %v1547 = vmul.bf16 %v1534, %v1367
        %v1548 = vmul.bf16 %v1535, %v1374
        %v1549 = vmul.bf16 %v1540, %v1381
        %1550 = vrot.lane.b32.xlu0 %v493, 17
        %v1551 = vpop.permute.xlu0 %1550
        %1552 = vrot.lane.b32.xlu0 %v492, 17
        %v1553 = vpop.permute.xlu0 %1552
        %v1554 = vsel %vm526, %v1391, %v1553
        %v1555 = vsel %vm526, %v1553, %v1551
        %v1560 = vsel %vm541, %v1551, %v521
        %v1562 = vmul.bf16 %v1560, %v572
        %v1563 = vmul.bf16 %v531, %v579
        %v1564 = vmul.bf16 %v532, %v586
        %v1565 = vmul.bf16 %v533, %v593
        %v1566 = vmul.bf16 %v1394, %v600
        %v1567 = vmul.bf16 %v1395, %v607
        %v1568 = vmul.bf16 %v1554, %v614
        %v1569 = vmul.bf16 %v1555, %v621
        %1570 = vrot.lane.b32.xlu0 %v493, 16
        %v1571 = vpop.permute.xlu0 %1570
        %1572 = vrot.lane.b32.xlu0 %v492, 16
        %v1573 = vpop.permute.xlu0 %1572
        %v1574 = vsel %vm646, %v1411, %v1573
        %v1575 = vsel %vm646, %v1573, %v1571
        %v1580 = vsel %vm661, %v1571, %v641
        %v1582 = vmul.bf16 %v1580, %v672
        %v1583 = vmul.bf16 %v651, %v679
        %v1584 = vmul.bf16 %v652, %v686
        %v1585 = vmul.bf16 %v653, %v693
        %v1586 = vmul.bf16 %v1414, %v700
        %v1587 = vmul.bf16 %v1415, %v707
        %v1588 = vmul.bf16 %v1574, %v714
        %v1589 = vmul.bf16 %v1575, %v721
        %1590 = vrot.lane.b32.xlu0 %v493, 15
        %v1591 = vpop.permute.xlu0 %1590
        %1592 = vrot.lane.b32.xlu0 %v492, 15
        %v1593 = vpop.permute.xlu0 %1592
        %v1594 = vsel %vm746, %v1431, %v1593
        %v1595 = vsel %vm746, %v1593, %v1591
        %v1600 = vsel %vm761, %v1591, %v741
        %v1602 = vmul.bf16 %v1600, %v792
        %v1603 = vmul.bf16 %v751, %v799
        %v1604 = vmul.bf16 %v752, %v806
        %v1605 = vmul.bf16 %v753, %v813
        %v1606 = vmul.bf16 %v1434, %v820
        %v1607 = vmul.bf16 %v1435, %v827
        %v1608 = vmul.bf16 %v1594, %v834
        %v1609 = vmul.bf16 %v1595, %v841
        %1610 = vrot.lane.b32.xlu0 %v493, 1
        %v1611 = vpop.permute.xlu0 %1610
        %1612 = vrot.lane.b32.xlu0 %v492, 1
        %v1613 = vpop.permute.xlu0 %1612
        %v1614 = vsel %vm866, %v1451, %v1613
        %v1615 = vsel %vm866, %v1613, %v1611
        %v1620 = vsel %vm881, %v1611, %v861
        %v1622 = vmul.bf16 %v1620, %v892
        %v1623 = vmul.bf16 %v871, %v899
        %v1624 = vmul.bf16 %v872, %v906
        %v1625 = vmul.bf16 %v873, %v913
        %v1626 = vmul.bf16 %v1454, %v920
        %v1627 = vmul.bf16 %v1455, %v927
        %v1628 = vmul.bf16 %v1614, %v934
        %v1629 = vmul.bf16 %v1615, %v941
        %1630 = vrot.lane.b32.xlu0 %v492, 127
        %v1631 = vpop.permute.xlu0 %1630
        %1632 = vrot.lane.b32.xlu0 %v493, 127
        %v1633 = vpop.permute.xlu0 %1632
        %v1634 = vsel %vm966, %v1473, %v1631
        %v1635 = vsel %vm966, %v1631, %v1633
        %v1640 = vsel %vm981, %v1633, %v959
        %v1642 = vmul.bf16 %v971, %v1012
        %v1643 = vmul.bf16 %v972, %v1019
        %v1644 = vmul.bf16 %v973, %v1026
        %v1645 = vmul.bf16 %v1474, %v1033
        %v1646 = vmul.bf16 %v1475, %v1040
        %v1647 = vmul.bf16 %v1634, %v1047
        %v1648 = vmul.bf16 %v1635, %v1054
        %v1649 = vmul.bf16 %v1640, %v1061
        %1650 = vrot.lane.b32.xlu0 %v492, 113
        %v1651 = vpop.permute.xlu0 %1650
        %1652 = vrot.lane.b32.xlu0 %v493, 113
        %v1653 = vpop.permute.xlu0 %1652
        %v1654 = vsel %vm1086, %v1493, %v1651
        %v1655 = vsel %vm1086, %v1651, %v1653
        %v1660 = vsel %vm1101, %v1653, %v1079
        %v1662 = vmul.bf16 %v1091, %v1112
        %v1663 = vmul.bf16 %v1092, %v1119
        %v1664 = vmul.bf16 %v1093, %v1126
        %v1665 = vmul.bf16 %v1494, %v1133
        %v1666 = vmul.bf16 %v1495, %v1140
        %v1667 = vmul.bf16 %v1654, %v1147
        %v1668 = vmul.bf16 %v1655, %v1154
        %v1669 = vmul.bf16 %v1660, %v1161
        %1670 = vrot.lane.b32.xlu0 %v492, 112
        %v1671 = vpop.permute.xlu0 %1670
        %1672 = vrot.lane.b32.xlu0 %v493, 112
        %v1673 = vpop.permute.xlu0 %1672
        %v1674 = vsel %vm1186, %v1513, %v1671
        %v1675 = vsel %vm1186, %v1671, %v1673
        %v1680 = vsel %vm1201, %v1673, %v1179
        %v1682 = vmul.bf16 %v1191, %v1232
        %v1683 = vmul.bf16 %v1192, %v1239
        %v1684 = vmul.bf16 %v1193, %v1246
        %v1685 = vmul.bf16 %v1514, %v1253
        %v1686 = vmul.bf16 %v1515, %v1260
        %v1687 = vmul.bf16 %v1674, %v1267
        %v1688 = vmul.bf16 %v1675, %v1274
        %v1689 = vmul.bf16 %v1680, %v1281
        %1690 = vrot.lane.b32.xlu0 %v492, 111
        %v1691 = vpop.permute.xlu0 %1690
        %1692 = vrot.lane.b32.xlu0 %v493, 111
        %v1693 = vpop.permute.xlu0 %1692
        %v1694 = vsel %vm1306, %v1533, %v1691
        %v1695 = vsel %vm1306, %v1691, %v1693
        %v1700 = vsel %vm1321, %v1693, %v1299
        %v1702 = vmul.bf16 %v1311, %v1332
        %v1703 = vmul.bf16 %v1312, %v1339
        %v1704 = vmul.bf16 %v1313, %v1346
        %v1705 = vmul.bf16 %v1534, %v1353
        %v1706 = vmul.bf16 %v1535, %v1360
        %v1707 = vmul.bf16 %v1694, %v1367
        %v1708 = vmul.bf16 %v1695, %v1374
        %v1709 = vmul.bf16 %v1700, %v1381
        %v1718 = vrot.slane %v722, 6
        %v1719 = vrot.slane %v723, 6
        %v1720 = vrot.slane %v724, 6
        %v1721 = vrot.slane %v725, 6
        %v1722 = vrot.slane %v726, 6
        %v1723 = vrot.slane %v727, 6
        %v1724 = vrot.slane %v728, 6
        %v1725 = vrot.slane %v729, 6
        %v1734 = vrot.slane %v842, 4
        %v1735 = vrot.slane %v843, 4
        %v1736 = vrot.slane %v844, 4
        %v1737 = vrot.slane %v845, 4
        %v1738 = vrot.slane %v846, 4
        %v1739 = vrot.slane %v847, 4
        %v1740 = vrot.slane %v848, 4
        %v1741 = vrot.slane %v849, 4
        %v1750 = vrot.slane %v942, 2
        %v1751 = vrot.slane %v943, 2
        %v1752 = vrot.slane %v944, 2
        %v1753 = vrot.slane %v945, 2
        %v1754 = vrot.slane %v946, 2
        %v1755 = vrot.slane %v947, 2
        %v1756 = vrot.slane %v948, 2
        %v1757 = vrot.slane %v949, 2
        %v1766 = vrot.slane %v1062, 6
        %v1767 = vrot.slane %v1063, 6
        %v1768 = vrot.slane %v1064, 6
        %v1769 = vrot.slane %v1065, 6
        %v1770 = vrot.slane %v1066, 6
        %v1771 = vrot.slane %v1067, 6
        %v1772 = vrot.slane %v1068, 6
        %v1773 = vrot.slane %v1069, 6
        %v1782 = vrot.slane %v1162, 4
        %v1783 = vrot.slane %v1163, 4
        %v1784 = vrot.slane %v1164, 4
        %v1785 = vrot.slane %v1165, 4
        %v1786 = vrot.slane %v1166, 4
        %v1787 = vrot.slane %v1167, 4
        %v1788 = vrot.slane %v1168, 4
        %v1789 = vrot.slane %v1169, 4
        %v1798 = vrot.slane %v1282, 2
        %v1799 = vrot.slane %v1283, 2
        %v1800 = vrot.slane %v1284, 2
        %v1801 = vrot.slane %v1285, 2
        %v1802 = vrot.slane %v1286, 2
        %v1803 = vrot.slane %v1287, 2
        %v1804 = vrot.slane %v1288, 2
        %v1805 = vrot.slane %v1289, 2
        %v1814 = vrot.slane %v1402, 6
        %v1815 = vrot.slane %v1403, 6
        %v1816 = vrot.slane %v1404, 6
        %v1817 = vrot.slane %v1405, 6
        %v1818 = vrot.slane %v1406, 6
        %v1819 = vrot.slane %v1407, 6
        %v1820 = vrot.slane %v1408, 6
        %v1821 = vrot.slane %v1409, 6
        %v1830 = vrot.slane %v1422, 4
        %v1831 = vrot.slane %v1423, 4
        %v1832 = vrot.slane %v1424, 4
        %v1833 = vrot.slane %v1425, 4
        %v1834 = vrot.slane %v1426, 4
        %v1835 = vrot.slane %v1427, 4
        %v1836 = vrot.slane %v1428, 4
        %v1837 = vrot.slane %v1429, 4
        %v1846 = vrot.slane %v1442, 2
        %v1847 = vrot.slane %v1443, 2
        %v1848 = vrot.slane %v1444, 2
        %v1849 = vrot.slane %v1445, 2
        %v1850 = vrot.slane %v1446, 2
        %v1851 = vrot.slane %v1447, 2
        %v1852 = vrot.slane %v1448, 2
        %v1853 = vrot.slane %v1449, 2
        %v1854 = vcombine.low %v419, %v419
        %v1856 = vunpack.c.l.s4 1983009808
        %v1857 = vunpack.c.0.s8 %v1856
        %v1858 = vlaneseq
        %v1859 = vshrl.u32 %v1858, 7
        %v1860 = vsub.s32 %v1857, %v1859
        %v1861 = vrot.slane %v1854, %v1860
        %v1862 = vcombine.high %v1861, %v1861
        %v1863 = vcombine.low %v420, %v420
        %v1865 = vunpack.c.l.s4 1983009808
        %v1866 = vunpack.c.0.s8 %v1865
        %v1867 = vlaneseq
        %v1868 = vshrl.u32 %v1867, 7
        %v1869 = vsub.s32 %v1866, %v1868
        %v1870 = vrot.slane %v1863, %v1869
        %v1871 = vcombine.high %v1870, %v1870
        %v1880 = vrot.slane %v1482, 4
        %v1881 = vrot.slane %v1483, 4
        %v1882 = vrot.slane %v1484, 4
        %v1883 = vrot.slane %v1485, 4
        %v1884 = vrot.slane %v1486, 4
        %v1885 = vrot.slane %v1487, 4
        %v1886 = vrot.slane %v1488, 4
        %v1887 = vrot.slane %v1489, 4
        %v1896 = vrot.slane %v1502, 2
        %v1897 = vrot.slane %v1503, 2
        %v1898 = vrot.slane %v1504, 2
        %v1899 = vrot.slane %v1505, 2
        %v1900 = vrot.slane %v1506, 2
        %v1901 = vrot.slane %v1507, 2
        %v1902 = vrot.slane %v1508, 2
        %v1903 = vrot.slane %v1509, 2
        %vm1904 = vcmask 1041408
        %v1907 = vsel %vm1904, %v622, %v1718
        %v1910 = vsel %vm1904, %v623, %v1719
        %v1913 = vsel %vm1904, %v624, %v1720
        %v1916 = vsel %vm1904, %v625, %v1721
        %v1919 = vsel %vm1904, %v626, %v1722
        %v1922 = vsel %vm1904, %v627, %v1723
        %v1925 = vsel %vm1904, %v628, %v1724
        %v1928 = vsel %vm1904, %v629, %v1725
        %vm1929 = vcmask 1043456
        %v1931 = vsel %vm1929, %v1907, %v1734
        %v1933 = vsel %vm1929, %v1910, %v1735
        %v1935 = vsel %vm1929, %v1913, %v1736
        %v1937 = vsel %vm1929, %v1916, %v1737
        %v1939 = vsel %vm1929, %v1919, %v1738
        %v1941 = vsel %vm1929, %v1922, %v1739
        %v1943 = vsel %vm1929, %v1925, %v1740
        %v1945 = vsel %vm1929, %v1928, %v1741
        %vm1946 = vcmask 1045504
        %v1948 = vsel %vm1946, %v1931, %v1750
        %v1951 = vsel %vm1946, %v1933, %v1751
        %v1954 = vsel %vm1946, %v1935, %v1752
        %v1957 = vsel %vm1946, %v1937, %v1753
        %v1960 = vsel %vm1946, %v1939, %v1754
        %v1963 = vsel %vm1946, %v1941, %v1755
        %v1966 = vsel %vm1946, %v1943, %v1756
        %v1969 = vsel %vm1946, %v1945, %v1757
        %v1973 = vsel %vm1904, %v447, %v1766
        %v1976 = vsel %vm1904, %v448, %v1767
        %v1979 = vsel %vm1904, %v458, %v1768
        %v1982 = vsel %vm1904, %v466, %v1769
        %v1985 = vsel %vm1904, %v465, %v1770
        %v1988 = vsel %vm1904, %v467, %v1771
        %v1991 = vsel %vm1904, %v474, %v1772
        %v1994 = vsel %vm1904, %v475, %v1773
        %v1996 = vsel %vm1929, %v1973, %v1782
        %v1998 = vsel %vm1929, %v1976, %v1783
        %v2000 = vsel %vm1929, %v1979, %v1784
        %v2002 = vsel %vm1929, %v1982, %v1785
        %v2004 = vsel %vm1929, %v1985, %v1786
        %v2006 = vsel %vm1929, %v1988, %v1787
        %v2008 = vsel %vm1929, %v1991, %v1788
        %v2010 = vsel %vm1929, %v1994, %v1789
        %v2012 = vsel %vm1946, %v1996, %v1798
        %v2015 = vsel %vm1946, %v1998, %v1799
        %v2018 = vsel %vm1946, %v2000, %v1800
        %v2021 = vsel %vm1946, %v2002, %v1801
        %v2024 = vsel %vm1946, %v2004, %v1802
        %v2027 = vsel %vm1946, %v2006, %v1803
        %v2030 = vsel %vm1946, %v2008, %v1804
        %v2033 = vsel %vm1946, %v2010, %v1805
        %v2037 = vsel %vm1904, %v1382, %v1814
        %v2040 = vsel %vm1904, %v1383, %v1815
        %v2043 = vsel %vm1904, %v1384, %v1816
        %v2046 = vsel %vm1904, %v1385, %v1817
        %v2049 = vsel %vm1904, %v1386, %v1818
        %v2052 = vsel %vm1904, %v1387, %v1819
        %v2055 = vsel %vm1904, %v1388, %v1820
        %v2058 = vsel %vm1904, %v1389, %v1821
        %v2060 = vsel %vm1929, %v2037, %v1830
        %v2062 = vsel %vm1929, %v2040, %v1831
        %v2064 = vsel %vm1929, %v2043, %v1832
        %v2066 = vsel %vm1929, %v2046, %v1833
        %v2068 = vsel %vm1929, %v2049, %v1834
        %v2070 = vsel %vm1929, %v2052, %v1835
        %v2072 = vsel %vm1929, %v2055, %v1836
        %v2074 = vsel %vm1929, %v2058, %v1837
        %v2076 = vsel %vm1946, %v2060, %v1846
        %v2079 = vsel %vm1946, %v2062, %v1847
        %v2082 = vsel %vm1946, %v2064, %v1848
        %v2085 = vsel %vm1946, %v2066, %v1849
        %v2088 = vsel %vm1946, %v2068, %v1850
        %v2091 = vsel %vm1946, %v2070, %v1851
        %v2094 = vsel %vm1946, %v2072, %v1852
        %v2097 = vsel %vm1946, %v2074, %v1853
        %v2101 = vsel %vm1904, %v1462, %v1861
        %v2104 = vsel %vm1904, %v1463, %v1862
        %v2106 = vsel %vm1904, %v1464, %v458
        %v2108 = vsel %vm1904, %v1465, %v466
        %v2111 = vsel %vm1904, %v1466, %v1870
        %v2114 = vsel %vm1904, %v1467, %v1871
        %v2116 = vsel %vm1904, %v1468, %v474
        %v2118 = vsel %vm1904, %v1469, %v475
        %v2120 = vsel %vm1929, %v2101, %v1880
        %v2122 = vsel %vm1929, %v2104, %v1881
        %v2124 = vsel %vm1929, %v2106, %v1882
        %v2126 = vsel %vm1929, %v2108, %v1883
        %v2128 = vsel %vm1929, %v2111, %v1884
        %v2130 = vsel %vm1929, %v2114, %v1885
        %v2132 = vsel %vm1929, %v2116, %v1886
        %v2134 = vsel %vm1929, %v2118, %v1887
        %v2136 = vsel %vm1946, %v2120, %v1896
        %v2139 = vsel %vm1946, %v2122, %v1897
        %v2142 = vsel %vm1946, %v2124, %v1898
        %v2145 = vsel %vm1946, %v2126, %v1899
        %v2148 = vsel %vm1946, %v2128, %v1900
        %v2151 = vsel %vm1946, %v2130, %v1901
        %v2154 = vsel %vm1946, %v2132, %v1902
        %v2157 = vsel %vm1946, %v2134, %v1903
        %v2167 = vrot.slane %v1542, 6
        %v2168 = vrot.slane %v1543, 6
        %v2169 = vrot.slane %v1544, 6
        %v2170 = vrot.slane %v1545, 6
        %v2171 = vrot.slane %v1546, 6
        %v2172 = vrot.slane %v1547, 6
        %v2173 = vrot.slane %v1548, 6
        %v2174 = vrot.slane %v1549, 6
        %v2183 = vrot.slane %v1562, 4
        %v2184 = vrot.slane %v1563, 4
        %v2185 = vrot.slane %v1564, 4
        %v2186 = vrot.slane %v1565, 4
        %v2187 = vrot.slane %v1566, 4
        %v2188 = vrot.slane %v1567, 4
        %v2189 = vrot.slane %v1568, 4
        %v2190 = vrot.slane %v1569, 4
        %v2199 = vrot.slane %v1582, 2
        %v2200 = vrot.slane %v1583, 2
        %v2201 = vrot.slane %v1584, 2
        %v2202 = vrot.slane %v1585, 2
        %v2203 = vrot.slane %v1586, 2
        %v2204 = vrot.slane %v1587, 2
        %v2205 = vrot.slane %v1588, 2
        %v2206 = vrot.slane %v1589, 2
        %v2215 = vrot.slane %v1622, 6
        %v2216 = vrot.slane %v1623, 6
        %v2217 = vrot.slane %v1624, 6
        %v2218 = vrot.slane %v1625, 6
        %v2219 = vrot.slane %v1626, 6
        %v2220 = vrot.slane %v1627, 6
        %v2221 = vrot.slane %v1628, 6
        %v2222 = vrot.slane %v1629, 6
        %v2223 = vrot.slane %v465, 4
        %v2224 = vrot.slane %v467, 4
        %v2225 = vrot.slane %v474, 4
        %v2226 = vrot.slane %v475, 4
        %v2227 = vrot.slane %v483, 4
        %v2228 = vrot.slane %v484, 4
        %v2229 = vrot.slane %v492, 4
        %v2230 = vrot.slane %v493, 4
        %v2239 = vrot.slane %v1642, 2
        %v2240 = vrot.slane %v1643, 2
        %v2241 = vrot.slane %v1644, 2
        %v2242 = vrot.slane %v1645, 2
        %v2243 = vrot.slane %v1646, 2
        %v2244 = vrot.slane %v1647, 2
        %v2245 = vrot.slane %v1648, 2
        %v2246 = vrot.slane %v1649, 2
        %v2255 = vrot.slane %v1682, 6
        %v2256 = vrot.slane %v1683, 6
        %v2257 = vrot.slane %v1684, 6
        %v2258 = vrot.slane %v1685, 6
        %v2259 = vrot.slane %v1686, 6
        %v2260 = vrot.slane %v1687, 6
        %v2261 = vrot.slane %v1688, 6
        %v2262 = vrot.slane %v1689, 6
        %v2271 = vrot.slane %v1702, 4
        %v2272 = vrot.slane %v1703, 4
        %v2273 = vrot.slane %v1704, 4
        %v2274 = vrot.slane %v1705, 4
        %v2275 = vrot.slane %v1706, 4
        %v2276 = vrot.slane %v1707, 4
        %v2277 = vrot.slane %v1708, 4
        %v2278 = vrot.slane %v1709, 4
        %v2281 = vsel %vm1904, %v1522, %v2167
        %v2284 = vsel %vm1904, %v1523, %v2168
        %v2287 = vsel %vm1904, %v1524, %v2169
        %v2290 = vsel %vm1904, %v1525, %v2170
        %v2293 = vsel %vm1904, %v1526, %v2171
        %v2296 = vsel %vm1904, %v1527, %v2172
        %v2299 = vsel %vm1904, %v1528, %v2173
        %v2302 = vsel %vm1904, %v1529, %v2174
        %v2304 = vsel %vm1929, %v2281, %v2183
        %v2306 = vsel %vm1929, %v2284, %v2184
        %v2308 = vsel %vm1929, %v2287, %v2185
        %v2310 = vsel %vm1929, %v2290, %v2186
        %v2312 = vsel %vm1929, %v2293, %v2187
        %v2314 = vsel %vm1929, %v2296, %v2188
        %v2316 = vsel %vm1929, %v2299, %v2189
        %v2318 = vsel %vm1929, %v2302, %v2190
        %v2320 = vsel %vm1946, %v2304, %v2199
        %v2323 = vsel %vm1946, %v2306, %v2200
        %v2326 = vsel %vm1946, %v2308, %v2201
        %v2329 = vsel %vm1946, %v2310, %v2202
        %v2332 = vsel %vm1946, %v2312, %v2203
        %v2335 = vsel %vm1946, %v2314, %v2204
        %v2338 = vsel %vm1946, %v2316, %v2205
        %v2341 = vsel %vm1946, %v2318, %v2206
        %v2345 = vsel %vm1904, %v1602, %v2215
        %v2348 = vsel %vm1904, %v1603, %v2216
        %v2351 = vsel %vm1904, %v1604, %v2217
        %v2354 = vsel %vm1904, %v1605, %v2218
        %v2357 = vsel %vm1904, %v1606, %v2219
        %v2360 = vsel %vm1904, %v1607, %v2220
        %v2363 = vsel %vm1904, %v1608, %v2221
        %v2366 = vsel %vm1904, %v1609, %v2222
        %v2368 = vsel %vm1929, %v2345, %v2223
        %v2370 = vsel %vm1929, %v2348, %v2224
        %v2372 = vsel %vm1929, %v2351, %v2225
        %v2374 = vsel %vm1929, %v2354, %v2226
        %v2376 = vsel %vm1929, %v2357, %v2227
        %v2378 = vsel %vm1929, %v2360, %v2228
        %v2380 = vsel %vm1929, %v2363, %v2229
        %v2382 = vsel %vm1929, %v2366, %v2230
        %v2384 = vsel %vm1946, %v2368, %v2239
        %v2387 = vsel %vm1946, %v2370, %v2240
        %v2390 = vsel %vm1946, %v2372, %v2241
        %v2393 = vsel %vm1946, %v2374, %v2242
        %v2396 = vsel %vm1946, %v2376, %v2243
        %v2399 = vsel %vm1946, %v2378, %v2244
        %v2402 = vsel %vm1946, %v2380, %v2245
        %v2405 = vsel %vm1946, %v2382, %v2246
        %v2409 = vsel %vm1904, %v1662, %v2255
        %v2412 = vsel %vm1904, %v1663, %v2256
        %v2415 = vsel %vm1904, %v1664, %v2257
        %v2418 = vsel %vm1904, %v1665, %v2258
        %v2421 = vsel %vm1904, %v1666, %v2259
        %v2424 = vsel %vm1904, %v1667, %v2260
        %v2427 = vsel %vm1904, %v1668, %v2261
        %v2430 = vsel %vm1904, %v1669, %v2262
        %v2432 = vsel %vm1929, %v2409, %v2271
        %v2434 = vsel %vm1929, %v2412, %v2272
        %v2436 = vsel %vm1929, %v2415, %v2273
        %v2438 = vsel %vm1929, %v2418, %v2274
        %v2440 = vsel %vm1929, %v2421, %v2275
        %v2442 = vsel %vm1929, %v2424, %v2276
        %v2444 = vsel %vm1929, %v2427, %v2277
        %v2446 = vsel %vm1929, %v2430, %v2278
        %v2447 = vld [vmem:[%s3] sm:$0xf]
        %v2448 = vld [vmem:[%s4] sm:$0xff]
        %2450 = vset.pattern.permute.xlu0 0
        %2451 = vperm.xlu0 %2450, %v2448
        %v2452 = vpop.permute.xlu0 %2451
        %vm2454 = vcmask 883712
        %v2456 = vsel %vm2454, %v2447, 0
        %v2458 = vsel %vm1946, %v2432, 0
        %v2460 = vsel %vm1946, %v2434, 0
        %v2462 = vsel %vm1946, %v2436, 0
        %v2464 = vsel %vm1946, %v2438, 0
        %v2466 = vsel %vm1946, %v2440, 0
        %v2468 = vsel %vm1946, %v2442, 0
        %v2470 = vsel %vm1946, %v2444, 0
        %v2472 = vsel %vm1946, %v2446, 0
        %2474 = vmatprep.subr.bf16.mxu0 0
        %2475 = vmatpush1.bf16.msra.mxu0 0
        %2476 = vmatprep.subr.bf16.mxu0 %v2460
        %2477 = vmatpush1.bf16.msra.mxu0 %v2458
        %2478 = vmatprep.subr.bf16.mxu0 %v2387
        %2479 = vmatpush1.bf16.msra.mxu0 %v2384
        %2480 = vmatprep.subr.bf16.mxu0 %v2323
        %2481 = vmatpush1.bf16.msra.mxu0 %v2320
        %2482 = vmatprep.subr.bf16.mxu0 %v2139
        %2483 = vmatpush1.bf16.msra.mxu0 %v2136
        %2484 = vmatprep.subr.bf16.mxu0 %v2079
        %2485 = vmatpush1.bf16.msra.mxu0 %v2076
        %2486 = vmatprep.subr.bf16.mxu0 %v2015
        %2487 = vmatpush1.bf16.msra.mxu0 %v2012
        %2488 = vmatprep.subr.bf16.mxu0 %v1951
        %2489 = vmatpush1.bf16.msra.mxu0 %v1948
        %2490 = vmatprep.subr.bf16.mxu0 0
        %2491 = vmatpush2.bf16.msra.mxu0 0
        %2492 = vmatprep.subr.bf16.mxu0 0
        %2493 = vmatpush2.bf16.msra.mxu0 0
        %2494 = vmatprep.subr.bf16.mxu0 0
        %2495 = vmatpush2.bf16.msra.mxu0 0
        %2496 = vmatprep.subr.bf16.mxu0 0
        %2497 = vmatpush2.bf16.msra.mxu0 0
        %2498 = vmatprep.subr.bf16.mxu0 0
        %2499 = vmatpush2.bf16.msra.mxu0 0
        %2500 = vmatprep.subr.bf16.mxu0 0
        %2501 = vmatpush2.bf16.msra.mxu0 0
        %2502 = vmatprep.subr.bf16.mxu0 0
        %2503 = vmatpush2.bf16.msra.mxu0 0
        %2504 = vmatprep.subr.bf16.mxu0 0
        %2505 = vmatpush2.bf16.msra.mxu0 0
        %2506 = vmatprep.mubr.bf16.mxu0 0
        %2507 = vmatmul.mubr.bf16.gmra.mxu0 %v2456
        %v2508 = vpop.f32.mrf.mxu0
        %v2509 = vadd.f32 %v2452, %v2508
        %v2510 = vpop.f32.mrf.mxu0
        %v2511 = vadd.f32 %v2452, %v2510
        %v2512 = vpop.f32.mrf.mxu0
        %v2513 = vpop.f32.mrf.mxu0
        %2514 = vdwg.mxu0
        %2515 = vmatprep.subr.bf16.mxu0 0
        %2516 = vmatpush1.bf16.msra.mxu0 0
        %2517 = vmatprep.subr.bf16.mxu0 %v2464
        %2518 = vmatpush1.bf16.msra.mxu0 %v2462
        %2519 = vmatprep.subr.bf16.mxu0 %v2393
        %2520 = vmatpush1.bf16.msra.mxu0 %v2390
        %2521 = vmatprep.subr.bf16.mxu0 %v2329
        %2522 = vmatpush1.bf16.msra.mxu0 %v2326
        %2523 = vmatprep.subr.bf16.mxu0 %v2145
        %2524 = vmatpush1.bf16.msra.mxu0 %v2142
        %2525 = vmatprep.subr.bf16.mxu0 %v2085
        %2526 = vmatpush1.bf16.msra.mxu0 %v2082
        %2527 = vmatprep.subr.bf16.mxu0 %v2021
        %2528 = vmatpush1.bf16.msra.mxu0 %v2018
        %2529 = vmatprep.subr.bf16.mxu0 %v1957
        %2530 = vmatpush1.bf16.msra.mxu0 %v1954
        %2531 = vmatprep.subr.bf16.mxu0 0
        %2532 = vmatpush2.bf16.msra.mxu0 0
        %2533 = vmatprep.subr.bf16.mxu0 0
        %2534 = vmatpush2.bf16.msra.mxu0 0
        %2535 = vmatprep.subr.bf16.mxu0 0
        %2536 = vmatpush2.bf16.msra.mxu0 0
        %2537 = vmatprep.subr.bf16.mxu0 0
        %2538 = vmatpush2.bf16.msra.mxu0 0
        %2539 = vmatprep.subr.bf16.mxu0 0
        %2540 = vmatpush2.bf16.msra.mxu0 0
        %2541 = vmatprep.subr.bf16.mxu0 0
        %2542 = vmatpush2.bf16.msra.mxu0 0
        %2543 = vmatprep.subr.bf16.mxu0 0
        %2544 = vmatpush2.bf16.msra.mxu0 0
        %2545 = vmatprep.subr.bf16.mxu0 0
        %2546 = vmatpush2.bf16.msra.mxu0 0
        %2547 = vmatprep.mubr.bf16.mxu0 0
        %2548 = vmatmul.mubr.bf16.gmra.mxu0 %v2456
        %v2549 = vpop.f32.mrf.mxu0
        %v2550 = vadd.f32 %v2452, %v2549
        %v2551 = vpop.f32.mrf.mxu0
        %v2552 = vadd.f32 %v2452, %v2551
        %v2553 = vpop.f32.mrf.mxu0
        %v2554 = vpop.f32.mrf.mxu0
        %2555 = vdwg.mxu0
        %2556 = vmatprep.subr.bf16.mxu0 0
        %2557 = vmatpush1.bf16.msra.mxu0 0
        %2558 = vmatprep.subr.bf16.mxu0 %v2468
        %2559 = vmatpush1.bf16.msra.mxu0 %v2466
        %2560 = vmatprep.subr.bf16.mxu0 %v2399
        %2561 = vmatpush1.bf16.msra.mxu0 %v2396
        %2562 = vmatprep.subr.bf16.mxu0 %v2335
        %2563 = vmatpush1.bf16.msra.mxu0 %v2332
        %2564 = vmatprep.subr.bf16.mxu0 %v2151
        %2565 = vmatpush1.bf16.msra.mxu0 %v2148
        %2566 = vmatprep.subr.bf16.mxu0 %v2091
        %2567 = vmatpush1.bf16.msra.mxu0 %v2088
        %2568 = vmatprep.subr.bf16.mxu0 %v2027
        %2569 = vmatpush1.bf16.msra.mxu0 %v2024
        %2570 = vmatprep.subr.bf16.mxu0 %v1963
        %2571 = vmatpush1.bf16.msra.mxu0 %v1960
        %2572 = vmatprep.subr.bf16.mxu0 0
        %2573 = vmatpush2.bf16.msra.mxu0 0
        %2574 = vmatprep.subr.bf16.mxu0 0
        %2575 = vmatpush2.bf16.msra.mxu0 0
        %2576 = vmatprep.subr.bf16.mxu0 0
        %2577 = vmatpush2.bf16.msra.mxu0 0
        %2578 = vmatprep.subr.bf16.mxu0 0
        %2579 = vmatpush2.bf16.msra.mxu0 0
        %2580 = vmatprep.subr.bf16.mxu0 0
        %2581 = vmatpush2.bf16.msra.mxu0 0
        %2582 = vmatprep.subr.bf16.mxu0 0
        %2583 = vmatpush2.bf16.msra.mxu0 0
        %2584 = vmatprep.subr.bf16.mxu0 0
        %2585 = vmatpush2.bf16.msra.mxu0 0
        %2586 = vmatprep.subr.bf16.mxu0 0
        %2587 = vmatpush2.bf16.msra.mxu0 0
        %2588 = vmatprep.mubr.bf16.mxu0 0
        %2589 = vmatmul.mubr.bf16.gmra.mxu0 %v2456
        %v2590 = vpop.f32.mrf.mxu0
        %v2591 = vadd.f32 %v2452, %v2590
        %v2592 = vpop.f32.mrf.mxu0
        %v2593 = vadd.f32 %v2452, %v2592
        %v2594 = vpop.f32.mrf.mxu0
        %v2595 = vpop.f32.mrf.mxu0
        %2596 = vdwg.mxu0
        %2597 = vmatprep.subr.bf16.mxu0 0
        %2598 = vmatpush1.bf16.msra.mxu0 0
        %2599 = vmatprep.subr.bf16.mxu0 %v2472
        %2600 = vmatpush1.bf16.msra.mxu0 %v2470
        %2601 = vmatprep.subr.bf16.mxu0 %v2405
        %2602 = vmatpush1.bf16.msra.mxu0 %v2402
        %2603 = vmatprep.subr.bf16.mxu0 %v2341
        %2604 = vmatpush1.bf16.msra.mxu0 %v2338
        %2605 = vmatprep.subr.bf16.mxu0 %v2157
        %2606 = vmatpush1.bf16.msra.mxu0 %v2154
        %2607 = vmatprep.subr.bf16.mxu0 %v2097
        %2608 = vmatpush1.bf16.msra.mxu0 %v2094
        %2609 = vmatprep.subr.bf16.mxu0 %v2033
        %2610 = vmatpush1.bf16.msra.mxu0 %v2030
        %2611 = vmatprep.subr.bf16.mxu0 %v1969
        %2612 = vmatpush1.bf16.msra.mxu0 %v1966
        %2613 = vmatprep.subr.bf16.mxu0 0
        %2614 = vmatpush2.bf16.msra.mxu0 0
        %2615 = vmatprep.subr.bf16.mxu0 0
        %2616 = vmatpush2.bf16.msra.mxu0 0
        %2617 = vmatprep.subr.bf16.mxu0 0
        %2618 = vmatpush2.bf16.msra.mxu0 0
        %2619 = vmatprep.subr.bf16.mxu0 0
        %2620 = vmatpush2.bf16.msra.mxu0 0
        %2621 = vmatprep.subr.bf16.mxu0 0
        %2622 = vmatpush2.bf16.msra.mxu0 0
        %2623 = vmatprep.subr.bf16.mxu0 0
        %2624 = vmatpush2.bf16.msra.mxu0 0
        %2625 = vmatprep.subr.bf16.mxu0 0
        %2626 = vmatpush2.bf16.msra.mxu0 0
        %2627 = vmatprep.subr.bf16.mxu0 0
        %2628 = vmatpush2.bf16.msra.mxu0 0
        %2629 = vmatprep.mubr.bf16.mxu0 0
        %2630 = vmatmul.mubr.bf16.gmra.mxu0 %v2456
        %v2631 = vpop.f32.mrf.mxu0
        %v2632 = vadd.f32 %v2452, %v2631
        %v2633 = vpop.f32.mrf.mxu0
        %v2634 = vadd.f32 %v2452, %v2633
        %v2635 = vpop.f32.mrf.mxu0
        %v2636 = vpop.f32.mrf.mxu0
        %2637 = vdwg.mxu0
        %v2638 = vmax.f32 %v2509, 0.0
        %v2639 = vmax.f32 %v2511, 0.0
        %v2640 = vmax.f32 %v2550, 0.0
        %v2641 = vmax.f32 %v2552, 0.0
        %v2642 = vmax.f32 %v2591, 0.0
        %v2643 = vmax.f32 %v2593, 0.0
        %v2644 = vmax.f32 %v2632, 0.0
        %v2645 = vmax.f32 %v2634, 0.0
        %v2646 = vpack.c.bf16 %v2638, %v2638
        %v2647 = vpack.c.bf16 %v2639, %v2639
        %v2648 = vpack.c.bf16 %v2640, %v2640
        %v2649 = vpack.c.bf16 %v2641, %v2641
        %v2650 = vpack.c.bf16 %v2642, %v2642
        %v2651 = vpack.c.bf16 %v2643, %v2643
        %v2652 = vpack.c.bf16 %v2644, %v2644
        %v2653 = vpack.c.bf16 %v2645, %v2645
        %v2662 = vunpack.c.l.b16 %v2646
        %v2663 = vunpack.c.l.b16 %v2647
        %v2664 = vunpack.c.l.b16 %v2648
        %v2665 = vunpack.c.l.b16 %v2649
        %v2666 = vunpack.c.l.b16 %v2650
        %v2667 = vunpack.c.l.b16 %v2651
        %v2668 = vunpack.c.l.b16 %v2652
        %v2669 = vunpack.c.l.b16 %v2653
        %v2670 = vpack.c.b16 %v2663, %v2662
        %v2671 = vpack.c.b16 %v2665, %v2664
        %v2672 = vpack.c.b16 %v2667, %v2666
        %v2673 = vpack.c.b16 %v2669, %v2668
        %2678 = vst [vmem:[%s403] sm:$0xff] %v2670
        %2679 = vst [vmem:[%s403 + $0x8] sm:$0xff] %v2671
        %2680 = vst [vmem:[%s403 + $0x10] sm:$0xff] %v2672
        %2681 = vst [vmem:[%s403 + $0x18] sm:$0xff] %v2673
        %s2682 = sand.u32 %s212, 1
        %s2683 = scalar_lea.sflag [#allocation4], %s2682
        %s2684 = sand.u32 %s212, 1
        %s2685 = smul.addr %s2684, 32
        %s2686 = scalar_lea.vmem [#allocation10], %s2685
        // Predicated region
        $region61: #{tpu_custom_call.1} parent=43 // pred_check
          %p2687 = pneg %p222
        $region62: #{tpu_custom_call.1} parent=43 // pred_check_branch
          %2689 = sbr.rel (%p2687) target = $region64
        $region63: #{tpu_custom_call.1} parent=43 // pred_region
          %s2690 = smul.u32 8, %s32
          %s2692 = ssub.s32 512, 512
          %2693 = vsyncadd %s2683, %s2692
          %s2694 = smul.addr %s31, 16
          %s2695 = sadd.s32 %s2690, %s2694
          %s2696 = smul.addr %s2695, 64
          %s2697 = scalar_lea.hbm %s6, %s2696
          %s2699 = sshll.u32 %s2686, 4
          %s2700 = int_to_ptr.vmem [resolvable:$true] %s2699
          %2702 = dma.vmem_to_hbm [thread:$0]  %s2700, 512, %s2697, %s2683
        $region64: #{tpu_custom_call.1} parent=43 // pred_fallthru
          _
      $region44: #{tpu_custom_call.1} parent=5 // pred_fallthru
        _
      %p2703 = scmp.le.s32.totalorder 2, %s22
      // Predicated region
      $region65: #{tpu_custom_call.1} parent=5 // pred_check
        %p2704 = pneg %p2703
      $region66: #{tpu_custom_call.1} parent=5 // pred_check_branch
        %2706 = sbr.rel (%p2704) target = $region68
      $region67: #{tpu_custom_call.1} parent=5 // pred_region
        %s2707 = ssub.s32 %s22, 2
        // Predicated region
        $region69: #{tpu_custom_call.1} parent=67 // pred_check
          %p2708 = pneg %p228
        $region70: #{tpu_custom_call.1} parent=67 // pred_check_branch
          %2710 = sbr.rel (%p2708) target = $region72
        $region71: #{tpu_custom_call.1} parent=67 // pred_region
          %s2711 = sand.u32 %s213, 1
          %s2712 = scalar_lea.sflag [#allocation4], %s2711
          %s2713 = sand.u32 %s213, 1
          %s2714 = smul.addr %s2713, 32
          %s2715 = scalar_lea.vmem [#allocation10], %s2714
          %2716 = dma.done %s2712, 512
        $region72: #{tpu_custom_call.1} parent=67 // pred_fallthru
          _
      $region68: #{tpu_custom_call.1} parent=5 // pred_fallthru
        _
    $region6: #{tpu_custom_call.1} parent=1 // loop_footer
      %s26 = sadd.s32 1, %s22
    $region7: #{tpu_custom_call.1} parent=1 // loop_footer_branch
      %21 = sbr.rel target = $region3
    $region8: #{tpu_custom_call.1} parent=1 // loop_exit
      _
    %2717 = vsyncpa [#allocation3], 1
    %s2718 = scalar_lea.sflag [#allocation3], 1
    %2719 = vsyncpa %s2718, 1
    %2720 = vsyncpa [#allocation6], 1
    %s2721 = scalar_lea.sflag [#allocation6], 1
    %2722 = vsyncpa %s2721, 1
    %2723 = vsyncpa [#allocation9], 1
    %2724 = vsyncpa [#allocation4], 1
    %s2725 = scalar_lea.sflag [#allocation4], 1
    %2726 = vsyncpa %s2725, 1

</llo_original>
